<compile_context>
chip_gen: v5e
topology: v5e:2x2
jax: 0.10.0
libtpu: 0.0.40
codegen_flags: <defaults>
</compile_context>

<pallas_src>
import functools

import jax
import jax.numpy as jnp
from jax.experimental import pallas as pl
from jax.experimental.pallas import tpu as pltpu


_VMEM = pl.BlockSpec(memory_space=pltpu.MemorySpace.VMEM)


# ------------------------------- Pallas kernel ------------------------------

def _encoder_kernel(x_ref, h_ref, sup_ref, *refs, num_layers, num_supports,
                    max_step, rnn_units):
    """Fused DCRNN encoder forward.

    x_ref  : (B*N, F)       flattened input features (row = b*N + n)
    h_ref  : (L, B*N, U)    initial hidden state per layer
    sup_ref: (S, B*N, B*N)  block-diagonal diffusion supports kron(I_B, sup)
    refs   : per layer (Wg (M*C, 2U), bg (1, 2U), Wc (M*C, U), bc (1, U)),
             followed by the output ref o_ref (L, B*N, U).
    """
    o_ref = refs[-1]
    w_refs = refs[:-1]
    U = rnn_units
    sups = [sup_ref[s] for s in range(num_supports)]   # each (B*N, B*N)

    def diffusion_terms(x0):
        # Mirrors DCGRUCell._gconv exactly, *including* the reference torch
        # implementation's in-loop reassignment `x1, x0 = x2, x1` (x0 is NOT
        # reset between supports when max_diffusion_step >= 2).
        terms = [x0]
        for sup in sups:
            x1 = jnp.dot(sup, x0, preferred_element_type=jnp.float32)
            terms.append(x1)
            for _ in range(2, max_step + 1):
                x2 = 2.0 * jnp.dot(sup, x1,
                                   preferred_element_type=jnp.float32) - x0
                terms.append(x2)
                x1, x0 = x2, x1
        return terms

    x_in = x_ref[...]                                   # (B*N, Fin)
    for layer in range(num_layers):
        wg = w_refs[4 * layer][...]
        bg = w_refs[4 * layer + 1][...]
        wc = w_refs[4 * layer + 2][...]
        bc = w_refs[4 * layer + 3][...]
        hx = h_ref[layer]                               # (B*N, U)
        fin = x_in.shape[-1]

        # ----- gate gconv: single (B*N, M*C) @ (M*C, 2U) matmul -----
        g_terms = diffusion_terms(jnp.concatenate([x_in, hx], axis=-1))
        xg = jnp.concatenate(g_terms, axis=-1)          # (B*N, M*C)
        gate = jnp.dot(xg, wg, preferred_element_type=jnp.float32) + bg
        r = jax.nn.sigmoid(gate[:, :U])                 # lane slices in-kernel
        u = jax.nn.sigmoid(gate[:, U:])

        # ----- candidate gconv: reuse the x_in columns of the gate terms -----
        rh_terms = diffusion_terms(r * hx)
        xc = jnp.concatenate(
            [jnp.concatenate([tg[:, :fin], th], axis=-1)
             for tg, th in zip(g_terms, rh_terms)], axis=-1)   # (B*N, M*C)
        c = jnp.tanh(jnp.dot(xc, wc, preferred_element_type=jnp.float32) + bc)

        new = u * hx + (1.0 - u) * c                    # (B*N, U)
        o_ref[layer] = new
        x_in = new   # F.dropout(p=0) between layers -> identity


# ------------------------------- model glue ---------------------------------

def compute_dual_random_walk_supports(adj):
    """supports[0] = (D^-1 A)^T, supports[1] = (D_T^-1 A^T)^T (dense)."""
    def rw_t(a):
        d = jnp.sum(a, axis=1)
        d_inv = jnp.where(d > 0, 1.0 / d, 0.0)
        return (d_inv[:, None] * a).T
    return jnp.stack([rw_t(adj), rw_t(adj.T)]).astype(jnp.float32)


def block_diag_supports(supports, batch):
    """kron(I_B, sup) for each support: (S, N, N) -> (S, B*N, B*N).
    Lets the kernel diffuse all batches with a single MXU matmul, with no
    in-kernel transposes (rows stay b*N + n throughout)."""
    s, n, _ = supports.shape
    eye = jnp.eye(batch, dtype=supports.dtype)
    blk = jnp.einsum('ab,sij->saibj', eye, supports)
    return blk.reshape(s, batch * n, batch * n)


def encoder_forward(inputs, adj, params, *, num_nodes, num_features, rnn_units,
                    num_rnn_layers, max_diffusion_step, hidden_state=None):
    """EncoderModel.forward.  inputs: (B, N*F) -> (output (B, N*U),
    hidden (L, B, N*U)).  dropout defaults to 0 (identity)."""
    B = inputs.shape[0]
    N, F, U, L = num_nodes, num_features, rnn_units, num_rnn_layers
    supports = compute_dual_random_walk_supports(adj)          # (S, N, N)
    sup_blk = block_diag_supports(supports, B)                 # (S, B*N, B*N)
    if hidden_state is None:
        hidden_state = jnp.zeros((L, B, N * U), jnp.float32)

    # Contiguous (free) host-side reshapes into the kernel's row layout.
    x_in = inputs.reshape(B * N, F).astype(jnp.float32)
    h0 = hidden_state.reshape(L, B * N, U).astype(jnp.float32)

    flat_w = []
    for (Wg, bg, Wc, bc) in params:
        flat_w += [Wg, bg, Wc, bc]

    kernel = functools.partial(
        _encoder_kernel, num_layers=L, num_supports=supports.shape[0],
        max_step=max_diffusion_step, rnn_units=U)

    hidden = pl.pallas_call(
        kernel,
        out_shape=jax.ShapeDtypeStruct((L, B * N, U), jnp.float32),
        in_specs=[_VMEM] * (3 + 4 * L),
        out_specs=_VMEM,
    )(x_in, h0, sup_blk, *flat_w)

    hidden = hidden.reshape(L, B, N * U)     # contiguous reshape in XLA
    return hidden[-1], hidden


def init_params(key, num_features, rnn_units, num_rnn_layers, num_matrices):
    """Xavier-normal weights matching the torch layout (row = c*M + m), then
    permuted to rows = m*C + c so the kernel can concatenate diffusion terms
    along the feature axis and do one matmul.  Gate bias = 1.0 (bias_start),
    candidate bias = 0.0."""
    params = []
    U = rnn_units
    M = num_matrices
    for layer in range(num_rnn_layers):
        in_feat = num_features if layer == 0 else U
        C = in_feat + U
        rows = C * M
        key, k1, k2 = jax.random.split(key, 3)
        std_g = (2.0 / (rows + 2 * U)) ** 0.5
        std_c = (2.0 / (rows + U)) ** 0.5
        Wg = std_g * jax.random.normal(k1, (rows, 2 * U), jnp.float32)
        Wc = std_c * jax.random.normal(k2, (rows, U), jnp.float32)
        # torch row order (c, m) -> kernel row order (m, c)
        Wg = Wg.reshape(C, M, 2 * U).transpose(1, 0, 2).reshape(rows, 2 * U)
        Wc = Wc.reshape(C, M, U).transpose(1, 0, 2).reshape(rows, U)
        bg = jnp.full((1, 2 * U), 1.0, jnp.float32)   # bias_start = 1.0
        bc = jnp.zeros((1, U), jnp.float32)           # bias_start = 0.0
        params.append((Wg, bg, Wc, bc))
    return params


# ---------------------------- pure-JAX reference ----------------------------

def _ref_gconv(x_in, state, supports, w2, b, max_step):
    """Reference gconv with weight rows ordered (m, c), faithfully reproducing
    the torch code's x0 reassignment inside the Chebyshev loop."""
    x0 = jnp.concatenate([x_in, state], axis=-1)        # (B, N, C)
    terms = [x0]
    for s in range(supports.shape[0]):
        sup = supports[s]
        x1 = jnp.einsum('ij,bjc->bic', sup, x0)
        terms.append(x1)
        for _ in range(2, max_step + 1):
            x2 = 2.0 * jnp.einsum('ij,bjc->bic', sup, x1) - x0
            terms.append(x2)
            x1, x0 = x2, x1
    xs = jnp.concatenate(terms, axis=-1)                 # (B, N, M*C)
    return jnp.einsum('bnk,ko->bno', xs, w2) + b


def _ref_cell(x_in, hx, supports, params, U, K):
    Wg, bg, Wc, bc = params
    val = jax.nn.sigmoid(_ref_gconv(x_in, hx, supports, Wg, bg, K))
    r, u = val[..., :U], val[..., U:]
    c = jnp.tanh(_ref_gconv(x_in, r * hx, supports, Wc, bc, K))
    return u * hx + (1.0 - u) * c


def _ref_forward(inputs, adj, params, *, num_nodes, num_features, rnn_units,
                 num_rnn_layers, max_diffusion_step):
    B = inputs.shape[0]
    supports = compute_dual_random_walk_supports(adj)
    out = inputs.reshape(B, num_nodes, num_features)
    hidden_states = []
    for layer in range(num_rnn_layers):
        hx = jnp.zeros((B, num_nodes, rnn_units), jnp.float32)
        new = _ref_cell(out, hx, supports, params[layer], rnn_units,
                        max_diffusion_step)
        hidden_states.append(new.reshape(B, num_nodes * rnn_units))
        out = new
    return out.reshape(B, num_nodes * rnn_units), jnp.stack(hidden_states)


# ----------------------------------- main ------------------------------------

if __name__ == "__main__":
    B, N, F, U = 2, 16, 4, 32          # batch, nodes, features, rnn_units
    L, K = 2, 2                        # num_rnn_layers, max_diffusion_step
    NUM_SUPPORTS = 2                   # dual_random_walk
    M = NUM_SUPPORTS * K + 1

    key = jax.random.PRNGKey(0)
    k_in, k_adj, k_par = jax.random.split(key, 3)
    inputs = jax.random.normal(k_in, (B, N * F), jnp.float32)
    adj = jax.random.uniform(k_adj, (N, N), jnp.float32, minval=0.1, maxval=1.0)
    params = init_params(k_par, F, U, L, M)

    output, hidden = encoder_forward(
        inputs, adj, params, num_nodes=N, num_features=F, rnn_units=U,
        num_rnn_layers=L, max_diffusion_step=K)
    output, hidden = jax.block_until_ready((output, hidden))

    assert output.shape == (B, N * U)
    assert hidden.shape == (L, B, N * U)

    ref_out, ref_hidden = _ref_forward(
        inputs, adj, params, num_nodes=N, num_features=F, rnn_units=U,
        num_rnn_layers=L, max_diffusion_step=K)
    assert jnp.allclose(output, ref_out, atol=1e-3, rtol=1e-3)
    assert jnp.allclose(hidden, ref_hidden, atol=1e-3, rtol=1e-3)

    print("KERNEL_OK")
</pallas_src>

<mosaic_0001>
module attributes {stable_mosaic.version = 11 : i64} {
  func.func @_encoder_kernel(%arg0: memref<32x4xf32, #tpu.memory_space<vmem>>, %arg1: memref<2x32x32xf32, #tpu.memory_space<vmem>>, %arg2: memref<2x32x32xf32, #tpu.memory_space<vmem>>, %arg3: memref<180x64xf32, #tpu.memory_space<vmem>>, %arg4: memref<1x64xf32, #tpu.memory_space<vmem>>, %arg5: memref<180x32xf32, #tpu.memory_space<vmem>>, %arg6: memref<1x32xf32, #tpu.memory_space<vmem>>, %arg7: memref<320x64xf32, #tpu.memory_space<vmem>>, %arg8: memref<1x64xf32, #tpu.memory_space<vmem>>, %arg9: memref<320x32xf32, #tpu.memory_space<vmem>>, %arg10: memref<1x32xf32, #tpu.memory_space<vmem>>, %arg11: memref<2x32x32xf32, #tpu.memory_space<vmem>>) attributes {dimension_semantics = [], scalar_prefetch = 0 : i64, scratch_operands = 0 : i64, tpu.core_type = #tpu.core_type<tc>} {
    %c0 = arith.constant 0 : index
    %c0_0 = arith.constant 0 : index
    %c0_1 = arith.constant 0 : index
    %0 = vector.load %arg2[%c0, %c0_0, %c0_1] : memref<2x32x32xf32, #tpu.memory_space<vmem>>, vector<1x32x32xf32>
    %1 = vector.shape_cast %0 : vector<1x32x32xf32> to vector<32x32xf32>
    %c1 = arith.constant 1 : index
    %c0_2 = arith.constant 0 : index
    %c0_3 = arith.constant 0 : index
    %2 = vector.load %arg2[%c1, %c0_2, %c0_3] : memref<2x32x32xf32, #tpu.memory_space<vmem>>, vector<1x32x32xf32>
    %3 = vector.shape_cast %2 : vector<1x32x32xf32> to vector<32x32xf32>
    %c0_4 = arith.constant 0 : index
    %c0_5 = arith.constant 0 : index
    %4 = vector.load %arg0[%c0_4, %c0_5] : memref<32x4xf32, #tpu.memory_space<vmem>>, vector<32x4xf32>
    %c0_6 = arith.constant 0 : index
    %c0_7 = arith.constant 0 : index
    %5 = vector.load %arg3[%c0_6, %c0_7] : memref<180x64xf32, #tpu.memory_space<vmem>>, vector<180x64xf32>
    %c0_8 = arith.constant 0 : index
    %c0_9 = arith.constant 0 : index
    %6 = vector.load %arg4[%c0_8, %c0_9] : memref<1x64xf32, #tpu.memory_space<vmem>>, vector<1x64xf32>
    %c0_10 = arith.constant 0 : index
    %c0_11 = arith.constant 0 : index
    %7 = vector.load %arg5[%c0_10, %c0_11] : memref<180x32xf32, #tpu.memory_space<vmem>>, vector<180x32xf32>
    %c0_12 = arith.constant 0 : index
    %c0_13 = arith.constant 0 : index
    %8 = vector.load %arg6[%c0_12, %c0_13] : memref<1x32xf32, #tpu.memory_space<vmem>>, vector<1x32xf32>
    %c0_14 = arith.constant 0 : index
    %c0_15 = arith.constant 0 : index
    %c0_16 = arith.constant 0 : index
    %9 = vector.load %arg1[%c0_14, %c0_15, %c0_16] : memref<2x32x32xf32, #tpu.memory_space<vmem>>, vector<1x32x32xf32>
    %10 = vector.shape_cast %9 : vector<1x32x32xf32> to vector<32x32xf32>
    %11 = tpu.concatenate %4, %10 in 1 : vector<32x4xf32>, vector<32x32xf32> -> vector<32x36xf32>
    %cst = arith.constant dense<0.000000e+00> : vector<32x36xf32>
    %12 = tpu.matmul %1, %11, %cst {dimension_numbers = #tpu.dot_dimension_numbers<[1], [0], [0], [1], [0, 0, 1, 1], [], []>} : vector<32x32xf32>, vector<32x36xf32>, vector<32x36xf32> -> vector<32x36xf32>
    %cst_17 = arith.constant dense<0.000000e+00> : vector<32x36xf32>
    %13 = tpu.matmul %1, %12, %cst_17 {dimension_numbers = #tpu.dot_dimension_numbers<[1], [0], [0], [1], [0, 0, 1, 1], [], []>} : vector<32x32xf32>, vector<32x36xf32>, vector<32x36xf32> -> vector<32x36xf32>
    %cst_18 = arith.constant 2.000000e+00 : f32
    %14 = vector.broadcast %cst_18 : f32 to vector<32x36xf32>
    %15 = arith.mulf %14, %13 : vector<32x36xf32>
    %16 = arith.subf %15, %11 : vector<32x36xf32>
    %cst_19 = arith.constant dense<0.000000e+00> : vector<32x36xf32>
    %17 = tpu.matmul %3, %12, %cst_19 {dimension_numbers = #tpu.dot_dimension_numbers<[1], [0], [0], [1], [0, 0, 1, 1], [], []>} : vector<32x32xf32>, vector<32x36xf32>, vector<32x36xf32> -> vector<32x36xf32>
    %cst_20 = arith.constant dense<0.000000e+00> : vector<32x36xf32>
    %18 = tpu.matmul %3, %17, %cst_20 {dimension_numbers = #tpu.dot_dimension_numbers<[1], [0], [0], [1], [0, 0, 1, 1], [], []>} : vector<32x32xf32>, vector<32x36xf32>, vector<32x36xf32> -> vector<32x36xf32>
    %cst_21 = arith.constant 2.000000e+00 : f32
    %19 = vector.broadcast %cst_21 : f32 to vector<32x36xf32>
    %20 = arith.mulf %19, %18 : vector<32x36xf32>
    %21 = arith.subf %20, %12 : vector<32x36xf32>
    %22 = tpu.concatenate %11, %12, %16, %17, %21 in 1 : vector<32x36xf32>, vector<32x36xf32>, vector<32x36xf32>, vector<32x36xf32>, vector<32x36xf32> -> vector<32x180xf32>
    %cst_22 = arith.constant dense<0.000000e+00> : vector<32x64xf32>
    %23 = tpu.matmul %22, %5, %cst_22 {dimension_numbers = #tpu.dot_dimension_numbers<[1], [0], [0], [1], [0, 0, 1, 1], [], []>} : vector<32x180xf32>, vector<180x64xf32>, vector<32x64xf32> -> vector<32x64xf32>
    %24 = vector.broadcast %6 : vector<1x64xf32> to vector<32x64xf32>
    %25 = arith.addf %23, %24 : vector<32x64xf32>
    %26 = vector.extract_strided_slice %25 {offsets = [0, 0], sizes = [32, 32], strides = [1, 1]} : vector<32x64xf32> to vector<32x32xf32>
    %27 = arith.negf %26 : vector<32x32xf32>
    %28 = math.exp %27 : vector<32x32xf32>
    %cst_23 = arith.constant 1.000000e+00 : f32
    %29 = vector.broadcast %cst_23 : f32 to vector<32x32xf32>
    %30 = arith.addf %29, %28 : vector<32x32xf32>
    %31 = arith.divf %29, %30 : vector<32x32xf32>
    %32 = vector.extract_strided_slice %25 {offsets = [0, 32], sizes = [32, 32], strides = [1, 1]} : vector<32x64xf32> to vector<32x32xf32>
    %33 = arith.negf %32 : vector<32x32xf32>
    %34 = math.exp %33 : vector<32x32xf32>
    %cst_24 = arith.constant 1.000000e+00 : f32
    %35 = vector.broadcast %cst_24 : f32 to vector<32x32xf32>
    %36 = arith.addf %35, %34 : vector<32x32xf32>
    %37 = arith.divf %35, %36 : vector<32x32xf32>
    %38 = arith.mulf %31, %10 : vector<32x32xf32>
    %cst_25 = arith.constant dense<0.000000e+00> : vector<32x32xf32>
    %39 = tpu.matmul %1, %38, %cst_25 {dimension_numbers = #tpu.dot_dimension_numbers<[1], [0], [0], [1], [0, 0, 1, 1], [], []>} : vector<32x32xf32>, vector<32x32xf32>, vector<32x32xf32> -> vector<32x32xf32>
    %cst_26 = arith.constant dense<0.000000e+00> : vector<32x32xf32>
    %40 = tpu.matmul %1, %39, %cst_26 {dimension_numbers = #tpu.dot_dimension_numbers<[1], [0], [0], [1], [0, 0, 1, 1], [], []>} : vector<32x32xf32>, vector<32x32xf32>, vector<32x32xf32> -> vector<32x32xf32>
    %cst_27 = arith.constant 2.000000e+00 : f32
    %41 = vector.broadcast %cst_27 : f32 to vector<32x32xf32>
    %42 = arith.mulf %41, %40 : vector<32x32xf32>
    %43 = arith.subf %42, %38 : vector<32x32xf32>
    %cst_28 = arith.constant dense<0.000000e+00> : vector<32x32xf32>
    %44 = tpu.matmul %3, %39, %cst_28 {dimension_numbers = #tpu.dot_dimension_numbers<[1], [0], [0], [1], [0, 0, 1, 1], [], []>} : vector<32x32xf32>, vector<32x32xf32>, vector<32x32xf32> -> vector<32x32xf32>
    %cst_29 = arith.constant dense<0.000000e+00> : vector<32x32xf32>
    %45 = tpu.matmul %3, %44, %cst_29 {dimension_numbers = #tpu.dot_dimension_numbers<[1], [0], [0], [1], [0, 0, 1, 1], [], []>} : vector<32x32xf32>, vector<32x32xf32>, vector<32x32xf32> -> vector<32x32xf32>
    %cst_30 = arith.constant 2.000000e+00 : f32
    %46 = vector.broadcast %cst_30 : f32 to vector<32x32xf32>
    %47 = arith.mulf %46, %45 : vector<32x32xf32>
    %48 = arith.subf %47, %39 : vector<32x32xf32>
    %49 = vector.extract_strided_slice %11 {offsets = [0, 0], sizes = [32, 4], strides = [1, 1]} : vector<32x36xf32> to vector<32x4xf32>
    %50 = tpu.concatenate %49, %38 in 1 : vector<32x4xf32>, vector<32x32xf32> -> vector<32x36xf32>
    %51 = vector.extract_strided_slice %12 {offsets = [0, 0], sizes = [32, 4], strides = [1, 1]} : vector<32x36xf32> to vector<32x4xf32>
    %52 = tpu.concatenate %51, %39 in 1 : vector<32x4xf32>, vector<32x32xf32> -> vector<32x36xf32>
    %53 = vector.extract_strided_slice %16 {offsets = [0, 0], sizes = [32, 4], strides = [1, 1]} : vector<32x36xf32> to vector<32x4xf32>
    %54 = tpu.concatenate %53, %43 in 1 : vector<32x4xf32>, vector<32x32xf32> -> vector<32x36xf32>
    %55 = vector.extract_strided_slice %17 {offsets = [0, 0], sizes = [32, 4], strides = [1, 1]} : vector<32x36xf32> to vector<32x4xf32>
    %56 = tpu.concatenate %55, %44 in 1 : vector<32x4xf32>, vector<32x32xf32> -> vector<32x36xf32>
    %57 = vector.extract_strided_slice %21 {offsets = [0, 0], sizes = [32, 4], strides = [1, 1]} : vector<32x36xf32> to vector<32x4xf32>
    %58 = tpu.concatenate %57, %48 in 1 : vector<32x4xf32>, vector<32x32xf32> -> vector<32x36xf32>
    %59 = tpu.concatenate %50, %52, %54, %56, %58 in 1 : vector<32x36xf32>, vector<32x36xf32>, vector<32x36xf32>, vector<32x36xf32>, vector<32x36xf32> -> vector<32x180xf32>
    %cst_31 = arith.constant dense<0.000000e+00> : vector<32x32xf32>
    %60 = tpu.matmul %59, %7, %cst_31 {dimension_numbers = #tpu.dot_dimension_numbers<[1], [0], [0], [1], [0, 0, 1, 1], [], []>} : vector<32x180xf32>, vector<180x32xf32>, vector<32x32xf32> -> vector<32x32xf32>
    %61 = vector.broadcast %8 : vector<1x32xf32> to vector<32x32xf32>
    %62 = arith.addf %60, %61 : vector<32x32xf32>
    %63 = math.tanh %62 : vector<32x32xf32>
    %64 = arith.mulf %37, %10 : vector<32x32xf32>
    %cst_32 = arith.constant 1.000000e+00 : f32
    %65 = vector.broadcast %cst_32 : f32 to vector<32x32xf32>
    %66 = arith.subf %65, %37 : vector<32x32xf32>
    %67 = arith.mulf %66, %63 : vector<32x32xf32>
    %68 = arith.addf %64, %67 : vector<32x32xf32>
    %c0_33 = arith.constant 0 : index
    %c0_34 = arith.constant 0 : index
    %c0_35 = arith.constant 0 : index
    %69 = vector.load %arg11[%c0_33, %c0_34, %c0_35] : memref<2x32x32xf32, #tpu.memory_space<vmem>>, vector<1x32x32xf32>
    %70 = vector.shape_cast %69 : vector<1x32x32xf32> to vector<32x32xf32>
    %71 = vector.shape_cast %68 : vector<32x32xf32> to vector<1x32x32xf32>
    tpu.vector_store %arg11[%c0_33, %c0_34, %c0_35], %71 {strides = array<i32>} : memref<2x32x32xf32, #tpu.memory_space<vmem>>, vector<1x32x32xf32>,
    %c0_36 = arith.constant 0 : index
    %c0_37 = arith.constant 0 : index
    %72 = vector.load %arg7[%c0_36, %c0_37] : memref<320x64xf32, #tpu.memory_space<vmem>>, vector<320x64xf32>
    %c0_38 = arith.constant 0 : index
    %c0_39 = arith.constant 0 : index
    %73 = vector.load %arg8[%c0_38, %c0_39] : memref<1x64xf32, #tpu.memory_space<vmem>>, vector<1x64xf32>
    %c0_40 = arith.constant 0 : index
    %c0_41 = arith.constant 0 : index
    %74 = vector.load %arg9[%c0_40, %c0_41] : memref<320x32xf32, #tpu.memory_space<vmem>>, vector<320x32xf32>
    %c0_42 = arith.constant 0 : index
    %c0_43 = arith.constant 0 : index
    %75 = vector.load %arg10[%c0_42, %c0_43] : memref<1x32xf32, #tpu.memory_space<vmem>>, vector<1x32xf32>
    %c1_44 = arith.constant 1 : index
    %c0_45 = arith.constant 0 : index
    %c0_46 = arith.constant 0 : index
    %76 = vector.load %arg1[%c1_44, %c0_45, %c0_46] : memref<2x32x32xf32, #tpu.memory_space<vmem>>, vector<1x32x32xf32>
    %77 = vector.shape_cast %76 : vector<1x32x32xf32> to vector<32x32xf32>
    %78 = tpu.concatenate %68, %77 in 1 : vector<32x32xf32>, vector<32x32xf32> -> vector<32x64xf32>
    %cst_47 = arith.constant dense<0.000000e+00> : vector<32x64xf32>
    %79 = tpu.matmul %1, %78, %cst_47 {dimension_numbers = #tpu.dot_dimension_numbers<[1], [0], [0], [1], [0, 0, 1, 1], [], []>} : vector<32x32xf32>, vector<32x64xf32>, vector<32x64xf32> -> vector<32x64xf32>
    %cst_48 = arith.constant dense<0.000000e+00> : vector<32x64xf32>
    %80 = tpu.matmul %1, %79, %cst_48 {dimension_numbers = #tpu.dot_dimension_numbers<[1], [0], [0], [1], [0, 0, 1, 1], [], []>} : vector<32x32xf32>, vector<32x64xf32>, vector<32x64xf32> -> vector<32x64xf32>
    %cst_49 = arith.constant 2.000000e+00 : f32
    %81 = vector.broadcast %cst_49 : f32 to vector<32x64xf32>
    %82 = arith.mulf %81, %80 : vector<32x64xf32>
    %83 = arith.subf %82, %78 : vector<32x64xf32>
    %cst_50 = arith.constant dense<0.000000e+00> : vector<32x64xf32>
    %84 = tpu.matmul %3, %79, %cst_50 {dimension_numbers = #tpu.dot_dimension_numbers<[1], [0], [0], [1], [0, 0, 1, 1], [], []>} : vector<32x32xf32>, vector<32x64xf32>, vector<32x64xf32> -> vector<32x64xf32>
    %cst_51 = arith.constant dense<0.000000e+00> : vector<32x64xf32>
    %85 = tpu.matmul %3, %84, %cst_51 {dimension_numbers = #tpu.dot_dimension_numbers<[1], [0], [0], [1], [0, 0, 1, 1], [], []>} : vector<32x32xf32>, vector<32x64xf32>, vector<32x64xf32> -> vector<32x64xf32>
    %cst_52 = arith.constant 2.000000e+00 : f32
    %86 = vector.broadcast %cst_52 : f32 to vector<32x64xf32>
    %87 = arith.mulf %86, %85 : vector<32x64xf32>
    %88 = arith.subf %87, %79 : vector<32x64xf32>
    %89 = tpu.concatenate %78, %79, %83, %84, %88 in 1 : vector<32x64xf32>, vector<32x64xf32>, vector<32x64xf32>, vector<32x64xf32>, vector<32x64xf32> -> vector<32x320xf32>
    %cst_53 = arith.constant dense<0.000000e+00> : vector<32x64xf32>
    %90 = tpu.matmul %89, %72, %cst_53 {dimension_numbers = #tpu.dot_dimension_numbers<[1], [0], [0], [1], [0, 0, 1, 1], [], []>} : vector<32x320xf32>, vector<320x64xf32>, vector<32x64xf32> -> vector<32x64xf32>
    %91 = vector.broadcast %73 : vector<1x64xf32> to vector<32x64xf32>
    %92 = arith.addf %90, %91 : vector<32x64xf32>
    %93 = vector.extract_strided_slice %92 {offsets = [0, 0], sizes = [32, 32], strides = [1, 1]} : vector<32x64xf32> to vector<32x32xf32>
    %94 = arith.negf %93 : vector<32x32xf32>
    %95 = math.exp %94 : vector<32x32xf32>
    %cst_54 = arith.constant 1.000000e+00 : f32
    %96 = vector.broadcast %cst_54 : f32 to vector<32x32xf32>
    %97 = arith.addf %96, %95 : vector<32x32xf32>
    %98 = arith.divf %96, %97 : vector<32x32xf32>
    %99 = vector.extract_strided_slice %92 {offsets = [0, 32], sizes = [32, 32], strides = [1, 1]} : vector<32x64xf32> to vector<32x32xf32>
    %100 = arith.negf %99 : vector<32x32xf32>
    %101 = math.exp %100 : vector<32x32xf32>
    %cst_55 = arith.constant 1.000000e+00 : f32
    %102 = vector.broadcast %cst_55 : f32 to vector<32x32xf32>
    %103 = arith.addf %102, %101 : vector<32x32xf32>
    %104 = arith.divf %102, %103 : vector<32x32xf32>
    %105 = arith.mulf %98, %77 : vector<32x32xf32>
    %cst_56 = arith.constant dense<0.000000e+00> : vector<32x32xf32>
    %106 = tpu.matmul %1, %105, %cst_56 {dimension_numbers = #tpu.dot_dimension_numbers<[1], [0], [0], [1], [0, 0, 1, 1], [], []>} : vector<32x32xf32>, vector<32x32xf32>, vector<32x32xf32> -> vector<32x32xf32>
    %cst_57 = arith.constant dense<0.000000e+00> : vector<32x32xf32>
    %107 = tpu.matmul %1, %106, %cst_57 {dimension_numbers = #tpu.dot_dimension_numbers<[1], [0], [0], [1], [0, 0, 1, 1], [], []>} : vector<32x32xf32>, vector<32x32xf32>, vector<32x32xf32> -> vector<32x32xf32>
    %cst_58 = arith.constant 2.000000e+00 : f32
    %108 = vector.broadcast %cst_58 : f32 to vector<32x32xf32>
    %109 = arith.mulf %108, %107 : vector<32x32xf32>
    %110 = arith.subf %109, %105 : vector<32x32xf32>
    %cst_59 = arith.constant dense<0.000000e+00> : vector<32x32xf32>
    %111 = tpu.matmul %3, %106, %cst_59 {dimension_numbers = #tpu.dot_dimension_numbers<[1], [0], [0], [1], [0, 0, 1, 1], [], []>} : vector<32x32xf32>, vector<32x32xf32>, vector<32x32xf32> -> vector<32x32xf32>
    %cst_60 = arith.constant dense<0.000000e+00> : vector<32x32xf32>
    %112 = tpu.matmul %3, %111, %cst_60 {dimension_numbers = #tpu.dot_dimension_numbers<[1], [0], [0], [1], [0, 0, 1, 1], [], []>} : vector<32x32xf32>, vector<32x32xf32>, vector<32x32xf32> -> vector<32x32xf32>
    %cst_61 = arith.constant 2.000000e+00 : f32
    %113 = vector.broadcast %cst_61 : f32 to vector<32x32xf32>
    %114 = arith.mulf %113, %112 : vector<32x32xf32>
    %115 = arith.subf %114, %106 : vector<32x32xf32>
    %116 = vector.extract_strided_slice %78 {offsets = [0, 0], sizes = [32, 32], strides = [1, 1]} : vector<32x64xf32> to vector<32x32xf32>
    %117 = tpu.concatenate %116, %105 in 1 : vector<32x32xf32>, vector<32x32xf32> -> vector<32x64xf32>
    %118 = vector.extract_strided_slice %79 {offsets = [0, 0], sizes = [32, 32], strides = [1, 1]} : vector<32x64xf32> to vector<32x32xf32>
    %119 = tpu.concatenate %118, %106 in 1 : vector<32x32xf32>, vector<32x32xf32> -> vector<32x64xf32>
    %120 = vector.extract_strided_slice %83 {offsets = [0, 0], sizes = [32, 32], strides = [1, 1]} : vector<32x64xf32> to vector<32x32xf32>
    %121 = tpu.concatenate %120, %110 in 1 : vector<32x32xf32>, vector<32x32xf32> -> vector<32x64xf32>
    %122 = vector.extract_strided_slice %84 {offsets = [0, 0], sizes = [32, 32], strides = [1, 1]} : vector<32x64xf32> to vector<32x32xf32>
    %123 = tpu.concatenate %122, %111 in 1 : vector<32x32xf32>, vector<32x32xf32> -> vector<32x64xf32>
    %124 = vector.extract_strided_slice %88 {offsets = [0, 0], sizes = [32, 32], strides = [1, 1]} : vector<32x64xf32> to vector<32x32xf32>
    %125 = tpu.concatenate %124, %115 in 1 : vector<32x32xf32>, vector<32x32xf32> -> vector<32x64xf32>
    %126 = tpu.concatenate %117, %119, %121, %123, %125 in 1 : vector<32x64xf32>, vector<32x64xf32>, vector<32x64xf32>, vector<32x64xf32>, vector<32x64xf32> -> vector<32x320xf32>
    %cst_62 = arith.constant dense<0.000000e+00> : vector<32x32xf32>
    %127 = tpu.matmul %126, %74, %cst_62 {dimension_numbers = #tpu.dot_dimension_numbers<[1], [0], [0], [1], [0, 0, 1, 1], [], []>} : vector<32x320xf32>, vector<320x32xf32>, vector<32x32xf32> -> vector<32x32xf32>
    %128 = vector.broadcast %75 : vector<1x32xf32> to vector<32x32xf32>
    %129 = arith.addf %127, %128 : vector<32x32xf32>
    %130 = math.tanh %129 : vector<32x32xf32>
    %131 = arith.mulf %104, %77 : vector<32x32xf32>
    %cst_63 = arith.constant 1.000000e+00 : f32
    %132 = vector.broadcast %cst_63 : f32 to vector<32x32xf32>
    %133 = arith.subf %132, %104 : vector<32x32xf32>
    %134 = arith.mulf %133, %130 : vector<32x32xf32>
    %135 = arith.addf %131, %134 : vector<32x32xf32>
    %c1_64 = arith.constant 1 : index
    %c0_65 = arith.constant 0 : index
    %c0_66 = arith.constant 0 : index
    %136 = vector.load %arg11[%c1_64, %c0_65, %c0_66] : memref<2x32x32xf32, #tpu.memory_space<vmem>>, vector<1x32x32xf32>
    %137 = vector.shape_cast %136 : vector<1x32x32xf32> to vector<32x32xf32>
    %138 = vector.shape_cast %135 : vector<32x32xf32> to vector<1x32x32xf32>
    tpu.vector_store %arg11[%c1_64, %c0_65, %c0_66], %138 {strides = array<i32>} : memref<2x32x32xf32, #tpu.memory_space<vmem>>, vector<1x32x32xf32>,
    return
  }
}

</mosaic_0001>

<llo_original>
// kernel: tpu_custom_call.1
$region0: #{tpu_custom_call.1}
  #allocation0 [shape = 'u32[]', space=smem, size = 0x4, offset = 0x4, fixed_abs, tag = 'smem constant byte address 0x4 - core index']
  #allocation1 [shape = 'u32[72,128]{1,0:T(1,128)}', space=vmem, size = 0x9000, scoped, tag = 'internal scratch']
  %s0 = inlined_call_operand.vmem [shape: f32[32,4], index: 0, kind: input, shape index: {}]
  %s1 = inlined_call_operand.vmem [shape: f32[2,32,32], index: 1, kind: input, shape index: {}]
  %s2 = inlined_call_operand.vmem [shape: f32[2,32,32], index: 2, kind: input, shape index: {}]
  %s3 = inlined_call_operand.vmem [shape: f32[180,64], index: 3, kind: input, shape index: {}]
  %s4 = inlined_call_operand.vmem [shape: f32[1,64], index: 4, kind: input, shape index: {}]
  %s5 = inlined_call_operand.vmem [shape: f32[180,32], index: 5, kind: input, shape index: {}]
  %s6 = inlined_call_operand.vmem [shape: f32[1,32], index: 6, kind: input, shape index: {}]
  %s7 = inlined_call_operand.vmem [shape: f32[320,64], index: 7, kind: input, shape index: {}]
  %s8 = inlined_call_operand.vmem [shape: f32[1,64], index: 8, kind: input, shape index: {}]
  %s9 = inlined_call_operand.vmem [shape: f32[320,32], index: 9, kind: input, shape index: {}]
  %s10 = inlined_call_operand.vmem [shape: f32[1,32], index: 10, kind: input, shape index: {}]
  %s11 = inlined_call_operand.hbm [shape: f32[2,32,32], index: 11, kind: output, shape index: {}]
  %s12 = sld [smem:[#allocation0]]
  $region54: #{tpu_custom_call.1} parent=0
    _
  %s14 = ssub.s32 1, %s12
  %s15 = scalar_select 0, %s14, %s12
  $region1: #{tpu_custom_call.1} parent=0
    #allocation2 [shape = 'u8[32768]{0}', space=vmem, size = 0x8000, scoped, tag = 'output window, operand 0, single buffered']
    #allocation3 [shape = 's32[1]{0}', space=sflag, size = 0x4, scoped, tag = 'scoped memory for tpu_custom_call.1']
    %16 = vsyncpa [#allocation3], 0
    // Predicated region
    $region2: #{tpu_custom_call.1} parent=1 // pred_check
      _
    $region3: #{tpu_custom_call.1} parent=1 // pred_check_branch
      %18 = sbr.rel (0) target = $region5
    $region4: #{tpu_custom_call.1} parent=1 // pred_region
      _
    $region5: #{tpu_custom_call.1} parent=1 // pred_fallthru
      _
    // Predicated region
    $region6: #{tpu_custom_call.1} parent=1 // pred_check
      _
    $region7: #{tpu_custom_call.1} parent=1 // pred_check_branch
      %20 = sbr.rel (0) target = $region9
    $region8: #{tpu_custom_call.1} parent=1 // pred_region
      _
    $region9: #{tpu_custom_call.1} parent=1 // pred_fallthru
      _
    // Predicated region
    $region10: #{tpu_custom_call.1} parent=1 // pred_check
      _
    $region11: #{tpu_custom_call.1} parent=1 // pred_check_branch
      %22 = sbr.rel (0) target = $region13
    $region12: #{tpu_custom_call.1} parent=1 // pred_region
      _
    $region13: #{tpu_custom_call.1} parent=1 // pred_fallthru
      _
    // Predicated region
    $region14: #{tpu_custom_call.1} parent=1 // pred_check
      _
    $region15: #{tpu_custom_call.1} parent=1 // pred_check_branch
      %24 = sbr.rel (0) target = $region17
    $region16: #{tpu_custom_call.1} parent=1 // pred_region
      _
    $region17: #{tpu_custom_call.1} parent=1 // pred_fallthru
      _
    // Predicated region
    $region18: #{tpu_custom_call.1} parent=1 // pred_check
      _
    $region19: #{tpu_custom_call.1} parent=1 // pred_check_branch
      %26 = sbr.rel (0) target = $region21
    $region20: #{tpu_custom_call.1} parent=1 // pred_region
      _
    $region21: #{tpu_custom_call.1} parent=1 // pred_fallthru
      _
    // Predicated region
    $region22: #{tpu_custom_call.1} parent=1 // pred_check
      _
    $region23: #{tpu_custom_call.1} parent=1 // pred_check_branch
      %28 = sbr.rel (0) target = $region25
    $region24: #{tpu_custom_call.1} parent=1 // pred_region
      _
    $region25: #{tpu_custom_call.1} parent=1 // pred_fallthru
      _
    // Predicated region
    $region26: #{tpu_custom_call.1} parent=1 // pred_check
      _
    $region27: #{tpu_custom_call.1} parent=1 // pred_check_branch
      %30 = sbr.rel (0) target = $region29
    $region28: #{tpu_custom_call.1} parent=1 // pred_region
      _
    $region29: #{tpu_custom_call.1} parent=1 // pred_fallthru
      _
    // Predicated region
    $region30: #{tpu_custom_call.1} parent=1 // pred_check
      _
    $region31: #{tpu_custom_call.1} parent=1 // pred_check_branch
      %32 = sbr.rel (0) target = $region33
    $region32: #{tpu_custom_call.1} parent=1 // pred_region
      _
    $region33: #{tpu_custom_call.1} parent=1 // pred_fallthru
      _
    // Predicated region
    $region34: #{tpu_custom_call.1} parent=1 // pred_check
      _
    $region35: #{tpu_custom_call.1} parent=1 // pred_check_branch
      %34 = sbr.rel (0) target = $region37
    $region36: #{tpu_custom_call.1} parent=1 // pred_region
      _
    $region37: #{tpu_custom_call.1} parent=1 // pred_fallthru
      _
    // Predicated region
    $region38: #{tpu_custom_call.1} parent=1 // pred_check
      _
    $region39: #{tpu_custom_call.1} parent=1 // pred_check_branch
      %36 = sbr.rel (0) target = $region41
    $region40: #{tpu_custom_call.1} parent=1 // pred_region
      _
    $region41: #{tpu_custom_call.1} parent=1 // pred_fallthru
      _
    // Predicated region
    $region42: #{tpu_custom_call.1} parent=1 // pred_check
      _
    $region43: #{tpu_custom_call.1} parent=1 // pred_check_branch
      %38 = sbr.rel (0) target = $region45
    $region44: #{tpu_custom_call.1} parent=1 // pred_region
      _
    $region45: #{tpu_custom_call.1} parent=1 // pred_fallthru
      _
    %v39 = vld [vmem:[%s2] sm:$0xff]
    %v40 = vld [vmem:[%s2 + $0x8] sm:$0xff]
    %v41 = vld [vmem:[%s2 + $0x10] sm:$0xff]
    %v42 = vld [vmem:[%s2 + $0x18] sm:$0xff]
    %s43 = scalar_lea.vmem %s2, 32
    %v44 = vld [vmem:[%s43] sm:$0xff]
    %v45 = vld [vmem:[%s43 + $0x8] sm:$0xff]
    %v46 = vld [vmem:[%s43 + $0x10] sm:$0xff]
    %v47 = vld [vmem:[%s43 + $0x18] sm:$0xff]
    %v48 = vld [vmem:[%s0] sm:$0xff]
    %v49 = vld [vmem:[%s0 + $0x8] sm:$0xff]
    %v50 = vld [vmem:[%s0 + $0x10] sm:$0xff]
    %v51 = vld [vmem:[%s0 + $0x18] sm:$0xff]
    %v52 = vld [vmem:[%s3] sm:$0xff]
    %v53 = vld [vmem:[%s3 + $0x8] sm:$0xff]
    %v54 = vld [vmem:[%s3 + $0x10] sm:$0xff]
    %v55 = vld [vmem:[%s3 + $0x18] sm:$0xff]
    %v56 = vld [vmem:[%s3 + $0x20] sm:$0xff]
    %v57 = vld [vmem:[%s3 + $0x28] sm:$0xff]
    %v58 = vld [vmem:[%s3 + $0x30] sm:$0xff]
    %v59 = vld [vmem:[%s3 + $0x38] sm:$0xff]
    %v60 = vld [vmem:[%s3 + $0x40] sm:$0xff]
    %v61 = vld [vmem:[%s3 + $0x48] sm:$0xff]
    %v62 = vld [vmem:[%s3 + $0x50] sm:$0xff]
    %v63 = vld [vmem:[%s3 + $0x58] sm:$0xff]
    %v64 = vld [vmem:[%s3 + $0x60] sm:$0xff]
    %v65 = vld [vmem:[%s3 + $0x68] sm:$0xff]
    %v66 = vld [vmem:[%s3 + $0x70] sm:$0xff]
    %v67 = vld [vmem:[%s3 + $0x78] sm:$0xff]
    %v68 = vld [vmem:[%s3 + $0x80] sm:$0xff]
    %v69 = vld [vmem:[%s3 + $0x88] sm:$0xff]
    %v70 = vld [vmem:[%s3 + $0x90] sm:$0xff]
    %v71 = vld [vmem:[%s3 + $0x98] sm:$0xff]
    %v72 = vld [vmem:[%s3 + $0xa0] sm:$0xff]
    %v73 = vld [vmem:[%s3 + $0xa8] sm:$0xff]
    %v74 = vld [vmem:[%s3 + $0xb0] sm:$0xf]
    %v75 = vld [vmem:[%s4] sm:$0x1]
    %v76 = vld [vmem:[%s5] sm:$0xff]
    %v77 = vld [vmem:[%s5 + $0x8] sm:$0xff]
    %v78 = vld [vmem:[%s5 + $0x10] sm:$0xff]
    %v79 = vld [vmem:[%s5 + $0x18] sm:$0xff]
    %v80 = vld [vmem:[%s5 + $0x20] sm:$0xff]
    %v81 = vld [vmem:[%s5 + $0x28] sm:$0xff]
    %v82 = vld [vmem:[%s5 + $0x30] sm:$0xff]
    %v83 = vld [vmem:[%s5 + $0x38] sm:$0xff]
    %v84 = vld [vmem:[%s5 + $0x40] sm:$0xff]
    %v85 = vld [vmem:[%s5 + $0x48] sm:$0xff]
    %v86 = vld [vmem:[%s5 + $0x50] sm:$0xff]
    %v87 = vld [vmem:[%s5 + $0x58] sm:$0xff]
    %v88 = vld [vmem:[%s5 + $0x60] sm:$0xff]
    %v89 = vld [vmem:[%s5 + $0x68] sm:$0xff]
    %v90 = vld [vmem:[%s5 + $0x70] sm:$0xff]
    %v91 = vld [vmem:[%s5 + $0x78] sm:$0xff]
    %v92 = vld [vmem:[%s5 + $0x80] sm:$0xff]
    %v93 = vld [vmem:[%s5 + $0x88] sm:$0xff]
    %v94 = vld [vmem:[%s5 + $0x90] sm:$0xff]
    %v95 = vld [vmem:[%s5 + $0x98] sm:$0xff]
    %v96 = vld [vmem:[%s5 + $0xa0] sm:$0xff]
    %v97 = vld [vmem:[%s5 + $0xa8] sm:$0xff]
    %v98 = vld [vmem:[%s5 + $0xb0] sm:$0xf]
    %v99 = vld [vmem:[%s6] sm:$0x1]
    %v100 = vld [vmem:[%s1] sm:$0xff]
    %v101 = vld [vmem:[%s1 + $0x8] sm:$0xff]
    %v102 = vld [vmem:[%s1 + $0x10] sm:$0xff]
    %v103 = vld [vmem:[%s1 + $0x18] sm:$0xff]
    %108 = vrot.lane.b32.xlu0 %v100, 4
    %v109 = vpop.permute.xlu0 %108
    %110 = vrot.lane.b32.xlu0 %v101, 4
    %v111 = vpop.permute.xlu0 %110
    %112 = vrot.lane.b32.xlu0 %v102, 4
    %v113 = vpop.permute.xlu0 %112
    %114 = vrot.lane.b32.xlu0 %v103, 4
    %v115 = vpop.permute.xlu0 %114
    %vm120 = vcmask 31744
    %v121 = vsel %vm120, %v48, %v109
    %v122 = vsel %vm120, %v49, %v111
    %v123 = vsel %vm120, %v50, %v113
    %v124 = vsel %vm120, %v51, %v115
    %vm125 = vcmask 261120
    %v127 = vsel %vm125, %v39, 0
    %v130 = vsel %vm125, %v40, 0
    %v133 = vsel %vm125, %v41, 0
    %v136 = vsel %vm125, %v42, 0
    %138 = vmatpush.msra.mxu0 0.0
    %139 = vmatpush.msra.mxu0 0.0
    %140 = vmatpush.msra.mxu0 0.0
    %141 = vmatpush.msra.mxu0 0.0
    %142 = vmatpush.msra.mxu0 0.0
    %143 = vmatpush.msra.mxu0 0.0
    %144 = vmatpush.msra.mxu0 0.0
    %145 = vmatpush.msra.mxu0 0.0
    %146 = vmatpush.msra.mxu0 0.0
    %147 = vmatpush.msra.mxu0 0.0
    %148 = vmatpush.msra.mxu0 0.0
    %149 = vmatpush.msra.mxu0 0.0
    %150 = vmatpush.msra.mxu0 %v124
    %151 = vmatpush.msra.mxu0 %v123
    %152 = vmatpush.msra.mxu0 %v122
    %153 = vmatpush.msra.mxu0 %v121
    %154 = vmatmul.f32.gmra.mxu0 %v127
    %v155 = vpop.f32.mrf.mxu0
    %v156 = vadd.f32 0.0, %v155
    %157 = vmatmul.f32.gmra.mxu0 %v130
    %v158 = vpop.f32.mrf.mxu0
    %v159 = vadd.f32 0.0, %v158
    %160 = vmatmul.f32.gmra.mxu0 %v133
    %v161 = vpop.f32.mrf.mxu0
    %v162 = vadd.f32 0.0, %v161
    %163 = vmatmul.f32.gmra.mxu0 %v136
    %v164 = vpop.f32.mrf.mxu0
    %v165 = vadd.f32 0.0, %v164
    %166 = vdwg.mxu0
    %167 = vmatpush.msra.mxu0 0.0
    %168 = vmatpush.msra.mxu0 0.0
    %169 = vmatpush.msra.mxu0 0.0
    %170 = vmatpush.msra.mxu0 0.0
    %171 = vmatpush.msra.mxu0 0.0
    %172 = vmatpush.msra.mxu0 0.0
    %173 = vmatpush.msra.mxu0 0.0
    %174 = vmatpush.msra.mxu0 0.0
    %175 = vmatpush.msra.mxu0 0.0
    %176 = vmatpush.msra.mxu0 0.0
    %177 = vmatpush.msra.mxu0 0.0
    %178 = vmatpush.msra.mxu0 0.0
    %179 = vmatpush.msra.mxu0 %v165
    %180 = vmatpush.msra.mxu0 %v162
    %181 = vmatpush.msra.mxu0 %v159
    %182 = vmatpush.msra.mxu0 %v156
    %183 = vmatmul.f32.gmra.mxu0 %v127
    %v184 = vpop.f32.mrf.mxu0
    %v185 = vadd.f32 0.0, %v184
    %186 = vmatmul.f32.gmra.mxu0 %v130
    %v187 = vpop.f32.mrf.mxu0
    %v188 = vadd.f32 0.0, %v187
    %189 = vmatmul.f32.gmra.mxu0 %v133
    %v190 = vpop.f32.mrf.mxu0
    %v191 = vadd.f32 0.0, %v190
    %192 = vmatmul.f32.gmra.mxu0 %v136
    %v193 = vpop.f32.mrf.mxu0
    %v194 = vadd.f32 0.0, %v193
    %195 = vdwg.mxu0
    %v196 = vmul.f32 %v185, 2.0
    %v197 = vmul.f32 %v188, 2.0
    %v198 = vmul.f32 %v191, 2.0
    %v199 = vmul.f32 %v194, 2.0
    %v200 = vsub.f32 %v196, %v121
    %v201 = vsub.f32 %v197, %v122
    %v202 = vsub.f32 %v198, %v123
    %v203 = vsub.f32 %v199, %v124
    %v205 = vsel %vm125, %v44, 0
    %v208 = vsel %vm125, %v45, 0
    %v211 = vsel %vm125, %v46, 0
    %v214 = vsel %vm125, %v47, 0
    %216 = vmatpush.msra.mxu0 0.0
    %217 = vmatpush.msra.mxu0 0.0
    %218 = vmatpush.msra.mxu0 0.0
    %219 = vmatpush.msra.mxu0 0.0
    %220 = vmatpush.msra.mxu0 0.0
    %221 = vmatpush.msra.mxu0 0.0
    %222 = vmatpush.msra.mxu0 0.0
    %223 = vmatpush.msra.mxu0 0.0
    %224 = vmatpush.msra.mxu0 0.0
    %225 = vmatpush.msra.mxu0 0.0
    %226 = vmatpush.msra.mxu0 0.0
    %227 = vmatpush.msra.mxu0 0.0
    %228 = vmatpush.msra.mxu0 %v165
    %229 = vmatpush.msra.mxu0 %v162
    %230 = vmatpush.msra.mxu0 %v159
    %231 = vmatpush.msra.mxu0 %v156
    %232 = vmatmul.f32.gmra.mxu0 %v205
    %v233 = vpop.f32.mrf.mxu0
    %v234 = vadd.f32 0.0, %v233
    %235 = vmatmul.f32.gmra.mxu0 %v208
    %v236 = vpop.f32.mrf.mxu0
    %v237 = vadd.f32 0.0, %v236
    %238 = vmatmul.f32.gmra.mxu0 %v211
    %v239 = vpop.f32.mrf.mxu0
    %v240 = vadd.f32 0.0, %v239
    %241 = vmatmul.f32.gmra.mxu0 %v214
    %v242 = vpop.f32.mrf.mxu0
    %v243 = vadd.f32 0.0, %v242
    %244 = vdwg.mxu0
    %245 = vmatpush.msra.mxu0 0.0
    %246 = vmatpush.msra.mxu0 0.0
    %247 = vmatpush.msra.mxu0 0.0
    %248 = vmatpush.msra.mxu0 0.0
    %249 = vmatpush.msra.mxu0 0.0
    %250 = vmatpush.msra.mxu0 0.0
    %251 = vmatpush.msra.mxu0 0.0
    %252 = vmatpush.msra.mxu0 0.0
    %253 = vmatpush.msra.mxu0 0.0
    %254 = vmatpush.msra.mxu0 0.0
    %255 = vmatpush.msra.mxu0 0.0
    %256 = vmatpush.msra.mxu0 0.0
    %257 = vmatpush.msra.mxu0 %v243
    %258 = vmatpush.msra.mxu0 %v240
    %259 = vmatpush.msra.mxu0 %v237
    %260 = vmatpush.msra.mxu0 %v234
    %261 = vmatmul.f32.gmra.mxu0 %v205
    %v262 = vpop.f32.mrf.mxu0
    %v263 = vadd.f32 0.0, %v262
    %264 = vmatmul.f32.gmra.mxu0 %v208
    %v265 = vpop.f32.mrf.mxu0
    %v266 = vadd.f32 0.0, %v265
    %267 = vmatmul.f32.gmra.mxu0 %v211
    %v268 = vpop.f32.mrf.mxu0
    %v269 = vadd.f32 0.0, %v268
    %270 = vmatmul.f32.gmra.mxu0 %v214
    %v271 = vpop.f32.mrf.mxu0
    %v272 = vadd.f32 0.0, %v271
    %273 = vdwg.mxu0
    %v274 = vmul.f32 %v263, 2.0
    %v275 = vmul.f32 %v266, 2.0
    %v276 = vmul.f32 %v269, 2.0
    %v277 = vmul.f32 %v272, 2.0
    %v278 = vsub.f32 %v274, %v156
    %v279 = vsub.f32 %v275, %v159
    %v280 = vsub.f32 %v276, %v162
    %v281 = vsub.f32 %v277, %v165
    %286 = vrot.lane.b32.xlu0 %v156, 36
    %v287 = vpop.permute.xlu0 %286
    %288 = vrot.lane.b32.xlu0 %v159, 36
    %v289 = vpop.permute.xlu0 %288
    %290 = vrot.lane.b32.xlu0 %v162, 36
    %v291 = vpop.permute.xlu0 %290
    %292 = vrot.lane.b32.xlu0 %v165, 36
    %v293 = vpop.permute.xlu0 %292
    %302 = vrot.lane.b32.xlu0 %v200, 72
    %v303 = vpop.permute.xlu0 %302
    %304 = vrot.lane.b32.xlu0 %v201, 72
    %v305 = vpop.permute.xlu0 %304
    %306 = vrot.lane.b32.xlu0 %v202, 72
    %v307 = vpop.permute.xlu0 %306
    %308 = vrot.lane.b32.xlu0 %v203, 72
    %v309 = vpop.permute.xlu0 %308
    %318 = vrot.lane.b32.xlu0 %v234, 108
    %v319 = vpop.permute.xlu0 %318
    %320 = vrot.lane.b32.xlu0 %v237, 108
    %v321 = vpop.permute.xlu0 %320
    %322 = vrot.lane.b32.xlu0 %v240, 108
    %v323 = vpop.permute.xlu0 %322
    %324 = vrot.lane.b32.xlu0 %v243, 108
    %v325 = vpop.permute.xlu0 %324
    %334 = vrot.lane.b32.xlu0 %v278, 16
    %v335 = vpop.permute.xlu0 %334
    %336 = vrot.lane.b32.xlu0 %v279, 16
    %v337 = vpop.permute.xlu0 %336
    %338 = vrot.lane.b32.xlu0 %v280, 16
    %v339 = vpop.permute.xlu0 %338
    %340 = vrot.lane.b32.xlu0 %v281, 16
    %v341 = vpop.permute.xlu0 %340
    %vm346 = vcmask 293888
    %v347 = vsel %vm346, %v121, %v287
    %v348 = vsel %vm346, %v122, %v289
    %v349 = vsel %vm346, %v123, %v291
    %v350 = vsel %vm346, %v124, %v293
    %vm351 = vcmask 588800
    %v352 = vsel %vm351, %v347, %v303
    %v353 = vsel %vm351, %v348, %v305
    %v354 = vsel %vm351, %v349, %v307
    %v355 = vsel %vm351, %v350, %v309
    %vm356 = vcmask 883712
    %v357 = vsel %vm356, %v352, %v319
    %v358 = vsel %vm356, %v353, %v321
    %v359 = vsel %vm356, %v354, %v323
    %v360 = vsel %vm356, %v355, %v325
    %vm361 = vcmask 130048
    %v362 = vsel %vm361, %v319, %v335
    %v363 = vsel %vm361, %v321, %v337
    %v364 = vsel %vm361, %v323, %v339
    %v365 = vsel %vm361, %v325, %v341
    %v367 = vperm.slane %v75, 0
    %vm369 = vcmask 424960
    %v371 = vsel %vm369, %v362, 0
    %v374 = vsel %vm369, %v363, 0
    %v377 = vsel %vm369, %v364, 0
    %v380 = vsel %vm369, %v365, 0
    %vm382 = vcmask 1043456
    %v384 = vsel %vm382, %v74, 0
    %386 = vmatpush.msra.mxu0 %v67
    %387 = vmatpush.msra.mxu0 %v66
    %388 = vmatpush.msra.mxu0 %v65
    %389 = vmatpush.msra.mxu0 %v64
    %390 = vmatpush.msra.mxu0 %v63
    %391 = vmatpush.msra.mxu0 %v62
    %392 = vmatpush.msra.mxu0 %v61
    %393 = vmatpush.msra.mxu0 %v60
    %394 = vmatpush.msra.mxu0 %v59
    %395 = vmatpush.msra.mxu0 %v58
    %396 = vmatpush.msra.mxu0 %v57
    %397 = vmatpush.msra.mxu0 %v56
    %398 = vmatpush.msra.mxu0 %v55
    %399 = vmatpush.msra.mxu0 %v54
    %400 = vmatpush.msra.mxu0 %v53
    %401 = vmatpush.msra.mxu0 %v52
    %402 = vmatmul.f32.gmra.mxu0 %v357
    %v403 = vpop.f32.mrf.mxu0
    %v404 = vadd.f32 %v367, %v403
    %405 = vmatmul.f32.gmra.mxu0 %v358
    %v406 = vpop.f32.mrf.mxu0
    %v407 = vadd.f32 %v367, %v406
    %408 = vmatmul.f32.gmra.mxu0 %v359
    %v409 = vpop.f32.mrf.mxu0
    %v410 = vadd.f32 %v367, %v409
    %411 = vmatmul.f32.gmra.mxu0 %v360
    %v412 = vpop.f32.mrf.mxu0
    %v413 = vadd.f32 %v367, %v412
    %414 = vdwg.mxu0
    %415 = vmatpush.msra.mxu0 0.0
    %416 = vmatpush.msra.mxu0 0.0
    %417 = vmatpush.msra.mxu0 0.0
    %418 = vmatpush.msra.mxu0 0.0
    %419 = vmatpush.msra.mxu0 0.0
    %420 = vmatpush.msra.mxu0 0.0
    %421 = vmatpush.msra.mxu0 0.0
    %422 = vmatpush.msra.mxu0 0.0
    %423 = vmatpush.msra.mxu0 0.0
    %424 = vmatpush.msra.mxu0 %v384
    %425 = vmatpush.msra.mxu0 %v73
    %426 = vmatpush.msra.mxu0 %v72
    %427 = vmatpush.msra.mxu0 %v71
    %428 = vmatpush.msra.mxu0 %v70
    %429 = vmatpush.msra.mxu0 %v69
    %430 = vmatpush.msra.mxu0 %v68
    %431 = vmatmul.f32.gmra.mxu0 %v371
    %v432 = vpop.f32.mrf.mxu0
    %v433 = vadd.f32 %v404, %v432
    %434 = vmatmul.f32.gmra.mxu0 %v374
    %v435 = vpop.f32.mrf.mxu0
    %v436 = vadd.f32 %v407, %v435
    %437 = vmatmul.f32.gmra.mxu0 %v377
    %v438 = vpop.f32.mrf.mxu0
    %v439 = vadd.f32 %v410, %v438
    %440 = vmatmul.f32.gmra.mxu0 %v380
    %v441 = vpop.f32.mrf.mxu0
    %v442 = vadd.f32 %v413, %v441
    %443 = vdwg.mxu0
    %v444 = vxor.u32 %v433, 2147483648
    %v445 = vxor.u32 %v436, 2147483648
    %v446 = vxor.u32 %v439, 2147483648
    %v447 = vxor.u32 %v442, 2147483648
    %v448 = vmul.f32 %v444, 1.442695
    %v449 = vpow.pop %v448
    %v450 = vmul.f32 %v445, 1.442695
    %v451 = vpow.pop %v450
    %v452 = vmul.f32 %v446, 1.442695
    %v453 = vpow.pop %v452
    %v454 = vmul.f32 %v447, 1.442695
    %v455 = vpow.pop %v454
    %v456 = vadd.f32 %v449, 1.0
    %v457 = vadd.f32 %v451, 1.0
    %v458 = vadd.f32 %v453, 1.0
    %v459 = vadd.f32 %v455, 1.0
    %v460 = vrcp.pop %v456
    %v461 = vmul.f32 %v456, %v460
    %v462 = vsub.f32 1.0, %v461
    %v463 = vmul.f32 %v460, %v462
    %v464 = vadd.f32 %v460, %v463
    %vm465 = vweird.f32 %v456
    %vm466 = vweird.f32 %v460
    %vm467 = vmor %vm465, %vm466
    %v468 = vsel %vm467, %v460, %v464
    %v469 = vand.u32 2147483647, %v456
    %vm470 = vcmp.eq.f32.partialorder %v469, 8.507059e+37
    %v471 = vand.u32 %v456, 2147483648
    %v472 = vor.u32 1.1754944e-38, %v471
    %v473 = vsel %vm470, %v472, %v468
    %v474 = vmul.f32 1.0, %v473
    %v475 = vrcp.pop %v457
    %v476 = vmul.f32 %v457, %v475
    %v477 = vsub.f32 1.0, %v476
    %v478 = vmul.f32 %v475, %v477
    %v479 = vadd.f32 %v475, %v478
    %vm480 = vweird.f32 %v457
    %vm481 = vweird.f32 %v475
    %vm482 = vmor %vm480, %vm481
    %v483 = vsel %vm482, %v475, %v479
    %v484 = vand.u32 2147483647, %v457
    %vm485 = vcmp.eq.f32.partialorder %v484, 8.507059e+37
    %v486 = vand.u32 %v457, 2147483648
    %v487 = vor.u32 1.1754944e-38, %v486
    %v488 = vsel %vm485, %v487, %v483
    %v489 = vmul.f32 1.0, %v488
    %v490 = vrcp.pop %v458
    %v491 = vmul.f32 %v458, %v490
    %v492 = vsub.f32 1.0, %v491
    %v493 = vmul.f32 %v490, %v492
    %v494 = vadd.f32 %v490, %v493
    %vm495 = vweird.f32 %v458
    %vm496 = vweird.f32 %v490
    %vm497 = vmor %vm495, %vm496
    %v498 = vsel %vm497, %v490, %v494
    %v499 = vand.u32 2147483647, %v458
    %vm500 = vcmp.eq.f32.partialorder %v499, 8.507059e+37
    %v501 = vand.u32 %v458, 2147483648
    %v502 = vor.u32 1.1754944e-38, %v501
    %v503 = vsel %vm500, %v502, %v498
    %v504 = vmul.f32 1.0, %v503
    %v505 = vrcp.pop %v459
    %v506 = vmul.f32 %v459, %v505
    %v507 = vsub.f32 1.0, %v506
    %v508 = vmul.f32 %v505, %v507
    %v509 = vadd.f32 %v505, %v508
    %vm510 = vweird.f32 %v459
    %vm511 = vweird.f32 %v505
    %vm512 = vmor %vm510, %vm511
    %v513 = vsel %vm512, %v505, %v509
    %v514 = vand.u32 2147483647, %v459
    %vm515 = vcmp.eq.f32.partialorder %v514, 8.507059e+37
    %v516 = vand.u32 %v459, 2147483648
    %v517 = vor.u32 1.1754944e-38, %v516
    %v518 = vsel %vm515, %v517, %v513
    %v519 = vmul.f32 1.0, %v518
    %v520 = vmul.f32 %v474, %v100
    %v521 = vmul.f32 %v489, %v101
    %v522 = vmul.f32 %v504, %v102
    %v523 = vmul.f32 %v519, %v103
    %524 = vmatpush.msra.mxu0 0.0
    %525 = vmatpush.msra.mxu0 0.0
    %526 = vmatpush.msra.mxu0 0.0
    %527 = vmatpush.msra.mxu0 0.0
    %528 = vmatpush.msra.mxu0 0.0
    %529 = vmatpush.msra.mxu0 0.0
    %530 = vmatpush.msra.mxu0 0.0
    %531 = vmatpush.msra.mxu0 0.0
    %532 = vmatpush.msra.mxu0 0.0
    %533 = vmatpush.msra.mxu0 0.0
    %534 = vmatpush.msra.mxu0 0.0
    %535 = vmatpush.msra.mxu0 0.0
    %536 = vmatpush.msra.mxu0 %v523
    %537 = vmatpush.msra.mxu0 %v522
    %538 = vmatpush.msra.mxu0 %v521
    %539 = vmatpush.msra.mxu0 %v520
    %540 = vmatmul.f32.gmra.mxu0 %v127
    %v541 = vpop.f32.mrf.mxu0
    %v542 = vadd.f32 0.0, %v541
    %543 = vmatmul.f32.gmra.mxu0 %v130
    %v544 = vpop.f32.mrf.mxu0
    %v545 = vadd.f32 0.0, %v544
    %546 = vmatmul.f32.gmra.mxu0 %v133
    %v547 = vpop.f32.mrf.mxu0
    %v548 = vadd.f32 0.0, %v547
    %549 = vmatmul.f32.gmra.mxu0 %v136
    %v550 = vpop.f32.mrf.mxu0
    %v551 = vadd.f32 0.0, %v550
    %552 = vdwg.mxu0
    %553 = vmatpush.msra.mxu0 0.0
    %554 = vmatpush.msra.mxu0 0.0
    %555 = vmatpush.msra.mxu0 0.0
    %556 = vmatpush.msra.mxu0 0.0
    %557 = vmatpush.msra.mxu0 0.0
    %558 = vmatpush.msra.mxu0 0.0
    %559 = vmatpush.msra.mxu0 0.0
    %560 = vmatpush.msra.mxu0 0.0
    %561 = vmatpush.msra.mxu0 0.0
    %562 = vmatpush.msra.mxu0 0.0
    %563 = vmatpush.msra.mxu0 0.0
    %564 = vmatpush.msra.mxu0 0.0
    %565 = vmatpush.msra.mxu0 %v551
    %566 = vmatpush.msra.mxu0 %v548
    %567 = vmatpush.msra.mxu0 %v545
    %568 = vmatpush.msra.mxu0 %v542
    %569 = vmatmul.f32.gmra.mxu0 %v127
    %v570 = vpop.f32.mrf.mxu0
    %v571 = vadd.f32 0.0, %v570
    %572 = vmatmul.f32.gmra.mxu0 %v130
    %v573 = vpop.f32.mrf.mxu0
    %v574 = vadd.f32 0.0, %v573
    %575 = vmatmul.f32.gmra.mxu0 %v133
    %v576 = vpop.f32.mrf.mxu0
    %v577 = vadd.f32 0.0, %v576
    %578 = vmatmul.f32.gmra.mxu0 %v136
    %v579 = vpop.f32.mrf.mxu0
    %v580 = vadd.f32 0.0, %v579
    %581 = vdwg.mxu0
    %v582 = vmul.f32 %v571, 2.0
    %v583 = vmul.f32 %v574, 2.0
    %v584 = vmul.f32 %v577, 2.0
    %v585 = vmul.f32 %v580, 2.0
    %v586 = vsub.f32 %v582, %v520
    %v587 = vsub.f32 %v583, %v521
    %v588 = vsub.f32 %v584, %v522
    %v589 = vsub.f32 %v585, %v523
    %590 = vmatpush.msra.mxu0 0.0
    %591 = vmatpush.msra.mxu0 0.0
    %592 = vmatpush.msra.mxu0 0.0
    %593 = vmatpush.msra.mxu0 0.0
    %594 = vmatpush.msra.mxu0 0.0
    %595 = vmatpush.msra.mxu0 0.0
    %596 = vmatpush.msra.mxu0 0.0
    %597 = vmatpush.msra.mxu0 0.0
    %598 = vmatpush.msra.mxu0 0.0
    %599 = vmatpush.msra.mxu0 0.0
    %600 = vmatpush.msra.mxu0 0.0
    %601 = vmatpush.msra.mxu0 0.0
    %602 = vmatpush.msra.mxu0 %v551
    %603 = vmatpush.msra.mxu0 %v548
    %604 = vmatpush.msra.mxu0 %v545
    %605 = vmatpush.msra.mxu0 %v542
    %606 = vmatmul.f32.gmra.mxu0 %v205
    %v607 = vpop.f32.mrf.mxu0
    %v608 = vadd.f32 0.0, %v607
    %609 = vmatmul.f32.gmra.mxu0 %v208
    %v610 = vpop.f32.mrf.mxu0
    %v611 = vadd.f32 0.0, %v610
    %612 = vmatmul.f32.gmra.mxu0 %v211
    %v613 = vpop.f32.mrf.mxu0
    %v614 = vadd.f32 0.0, %v613
    %615 = vmatmul.f32.gmra.mxu0 %v214
    %v616 = vpop.f32.mrf.mxu0
    %v617 = vadd.f32 0.0, %v616
    %618 = vdwg.mxu0
    %619 = vmatpush.msra.mxu0 0.0
    %620 = vmatpush.msra.mxu0 0.0
    %621 = vmatpush.msra.mxu0 0.0
    %622 = vmatpush.msra.mxu0 0.0
    %623 = vmatpush.msra.mxu0 0.0
    %624 = vmatpush.msra.mxu0 0.0
    %625 = vmatpush.msra.mxu0 0.0
    %626 = vmatpush.msra.mxu0 0.0
    %627 = vmatpush.msra.mxu0 0.0
    %628 = vmatpush.msra.mxu0 0.0
    %629 = vmatpush.msra.mxu0 0.0
    %630 = vmatpush.msra.mxu0 0.0
    %631 = vmatpush.msra.mxu0 %v617
    %632 = vmatpush.msra.mxu0 %v614
    %633 = vmatpush.msra.mxu0 %v611
    %634 = vmatpush.msra.mxu0 %v608
    %635 = vmatmul.f32.gmra.mxu0 %v205
    %v636 = vpop.f32.mrf.mxu0
    %v637 = vadd.f32 0.0, %v636
    %638 = vmatmul.f32.gmra.mxu0 %v208
    %v639 = vpop.f32.mrf.mxu0
    %v640 = vadd.f32 0.0, %v639
    %641 = vmatmul.f32.gmra.mxu0 %v211
    %v642 = vpop.f32.mrf.mxu0
    %v643 = vadd.f32 0.0, %v642
    %644 = vmatmul.f32.gmra.mxu0 %v214
    %v645 = vpop.f32.mrf.mxu0
    %v646 = vadd.f32 0.0, %v645
    %647 = vdwg.mxu0
    %v648 = vmul.f32 %v637, 2.0
    %v649 = vmul.f32 %v640, 2.0
    %v650 = vmul.f32 %v643, 2.0
    %v651 = vmul.f32 %v646, 2.0
    %v652 = vsub.f32 %v648, %v542
    %v653 = vsub.f32 %v649, %v545
    %v654 = vsub.f32 %v650, %v548
    %v655 = vsub.f32 %v651, %v551
    %660 = vrot.lane.b32.xlu0 %v520, 4
    %v661 = vpop.permute.xlu0 %660
    %662 = vrot.lane.b32.xlu0 %v521, 4
    %v663 = vpop.permute.xlu0 %662
    %664 = vrot.lane.b32.xlu0 %v522, 4
    %v665 = vpop.permute.xlu0 %664
    %666 = vrot.lane.b32.xlu0 %v523, 4
    %v667 = vpop.permute.xlu0 %666
    %v672 = vsel %vm120, %v121, %v661
    %v673 = vsel %vm120, %v122, %v663
    %v674 = vsel %vm120, %v123, %v665
    %v675 = vsel %vm120, %v124, %v667
    %680 = vrot.lane.b32.xlu0 %v542, 4
    %v681 = vpop.permute.xlu0 %680
    %682 = vrot.lane.b32.xlu0 %v545, 4
    %v683 = vpop.permute.xlu0 %682
    %684 = vrot.lane.b32.xlu0 %v548, 4
    %v685 = vpop.permute.xlu0 %684
    %686 = vrot.lane.b32.xlu0 %v551, 4
    %v687 = vpop.permute.xlu0 %686
    %v692 = vsel %vm120, %v156, %v681
    %v693 = vsel %vm120, %v159, %v683
    %v694 = vsel %vm120, %v162, %v685
    %v695 = vsel %vm120, %v165, %v687
    %700 = vrot.lane.b32.xlu0 %v586, 4
    %v701 = vpop.permute.xlu0 %700
    %702 = vrot.lane.b32.xlu0 %v587, 4
    %v703 = vpop.permute.xlu0 %702
    %704 = vrot.lane.b32.xlu0 %v588, 4
    %v705 = vpop.permute.xlu0 %704
    %706 = vrot.lane.b32.xlu0 %v589, 4
    %v707 = vpop.permute.xlu0 %706
    %v712 = vsel %vm120, %v200, %v701
    %v713 = vsel %vm120, %v201, %v703
    %v714 = vsel %vm120, %v202, %v705
    %v715 = vsel %vm120, %v203, %v707
    %720 = vrot.lane.b32.xlu0 %v608, 4
    %v721 = vpop.permute.xlu0 %720
    %722 = vrot.lane.b32.xlu0 %v611, 4
    %v723 = vpop.permute.xlu0 %722
    %724 = vrot.lane.b32.xlu0 %v614, 4
    %v725 = vpop.permute.xlu0 %724
    %726 = vrot.lane.b32.xlu0 %v617, 4
    %v727 = vpop.permute.xlu0 %726
    %v732 = vsel %vm120, %v234, %v721
    %v733 = vsel %vm120, %v237, %v723
    %v734 = vsel %vm120, %v240, %v725
    %v735 = vsel %vm120, %v243, %v727
    %740 = vrot.lane.b32.xlu0 %v652, 4
    %v741 = vpop.permute.xlu0 %740
    %742 = vrot.lane.b32.xlu0 %v653, 4
    %v743 = vpop.permute.xlu0 %742
    %744 = vrot.lane.b32.xlu0 %v654, 4
    %v745 = vpop.permute.xlu0 %744
    %746 = vrot.lane.b32.xlu0 %v655, 4
    %v747 = vpop.permute.xlu0 %746
    %v752 = vsel %vm120, %v278, %v741
    %v753 = vsel %vm120, %v279, %v743
    %v754 = vsel %vm120, %v280, %v745
    %v755 = vsel %vm120, %v281, %v747
    %760 = vrot.lane.b32.xlu0 %v692, 36
    %v761 = vpop.permute.xlu0 %760
    %762 = vrot.lane.b32.xlu0 %v693, 36
    %v763 = vpop.permute.xlu0 %762
    %764 = vrot.lane.b32.xlu0 %v694, 36
    %v765 = vpop.permute.xlu0 %764
    %766 = vrot.lane.b32.xlu0 %v695, 36
    %v767 = vpop.permute.xlu0 %766
    %776 = vrot.lane.b32.xlu0 %v712, 72
    %v777 = vpop.permute.xlu0 %776
    %778 = vrot.lane.b32.xlu0 %v713, 72
    %v779 = vpop.permute.xlu0 %778
    %780 = vrot.lane.b32.xlu0 %v714, 72
    %v781 = vpop.permute.xlu0 %780
    %782 = vrot.lane.b32.xlu0 %v715, 72
    %v783 = vpop.permute.xlu0 %782
    %792 = vrot.lane.b32.xlu0 %v732, 108
    %v793 = vpop.permute.xlu0 %792
    %794 = vrot.lane.b32.xlu0 %v733, 108
    %v795 = vpop.permute.xlu0 %794
    %796 = vrot.lane.b32.xlu0 %v734, 108
    %v797 = vpop.permute.xlu0 %796
    %798 = vrot.lane.b32.xlu0 %v735, 108
    %v799 = vpop.permute.xlu0 %798
    %808 = vrot.lane.b32.xlu0 %v752, 16
    %v809 = vpop.permute.xlu0 %808
    %810 = vrot.lane.b32.xlu0 %v753, 16
    %v811 = vpop.permute.xlu0 %810
    %812 = vrot.lane.b32.xlu0 %v754, 16
    %v813 = vpop.permute.xlu0 %812
    %814 = vrot.lane.b32.xlu0 %v755, 16
    %v815 = vpop.permute.xlu0 %814
    %v820 = vsel %vm346, %v672, %v761
    %v821 = vsel %vm346, %v673, %v763
    %v822 = vsel %vm346, %v674, %v765
    %v823 = vsel %vm346, %v675, %v767
    %v824 = vsel %vm351, %v820, %v777
    %v825 = vsel %vm351, %v821, %v779
    %v826 = vsel %vm351, %v822, %v781
    %v827 = vsel %vm351, %v823, %v783
    %v828 = vsel %vm356, %v824, %v793
    %v829 = vsel %vm356, %v825, %v795
    %v830 = vsel %vm356, %v826, %v797
    %v831 = vsel %vm356, %v827, %v799
    %v832 = vsel %vm361, %v793, %v809
    %v833 = vsel %vm361, %v795, %v811
    %v834 = vsel %vm361, %v797, %v813
    %v835 = vsel %vm361, %v799, %v815
    %v837 = vperm.slane %v99, 0
    %v840 = vsel %vm369, %v832, 0
    %v843 = vsel %vm369, %v833, 0
    %v846 = vsel %vm369, %v834, 0
    %v849 = vsel %vm369, %v835, 0
    %v852 = vsel %vm382, %v98, 0
    %854 = vmatpush.msra.mxu0 %v91
    %855 = vmatpush.msra.mxu0 %v90
    %856 = vmatpush.msra.mxu0 %v89
    %857 = vmatpush.msra.mxu0 %v88
    %858 = vmatpush.msra.mxu0 %v87
    %859 = vmatpush.msra.mxu0 %v86
    %860 = vmatpush.msra.mxu0 %v85
    %861 = vmatpush.msra.mxu0 %v84
    %862 = vmatpush.msra.mxu0 %v83
    %863 = vmatpush.msra.mxu0 %v82
    %864 = vmatpush.msra.mxu0 %v81
    %865 = vmatpush.msra.mxu0 %v80
    %866 = vmatpush.msra.mxu0 %v79
    %867 = vmatpush.msra.mxu0 %v78
    %868 = vmatpush.msra.mxu0 %v77
    %869 = vmatpush.msra.mxu0 %v76
    %870 = vmatmul.f32.gmra.mxu0 %v828
    %v871 = vpop.f32.mrf.mxu0
    %v872 = vadd.f32 %v837, %v871
    %873 = vmatmul.f32.gmra.mxu0 %v829
    %v874 = vpop.f32.mrf.mxu0
    %v875 = vadd.f32 %v837, %v874
    %876 = vmatmul.f32.gmra.mxu0 %v830
    %v877 = vpop.f32.mrf.mxu0
    %v878 = vadd.f32 %v837, %v877
    %879 = vmatmul.f32.gmra.mxu0 %v831
    %v880 = vpop.f32.mrf.mxu0
    %v881 = vadd.f32 %v837, %v880
    %882 = vdwg.mxu0
    %883 = vmatpush.msra.mxu0 0.0
    %884 = vmatpush.msra.mxu0 0.0
    %885 = vmatpush.msra.mxu0 0.0
    %886 = vmatpush.msra.mxu0 0.0
    %887 = vmatpush.msra.mxu0 0.0
    %888 = vmatpush.msra.mxu0 0.0
    %889 = vmatpush.msra.mxu0 0.0
    %890 = vmatpush.msra.mxu0 0.0
    %891 = vmatpush.msra.mxu0 0.0
    %892 = vmatpush.msra.mxu0 %v852
    %893 = vmatpush.msra.mxu0 %v97
    %894 = vmatpush.msra.mxu0 %v96
    %895 = vmatpush.msra.mxu0 %v95
    %896 = vmatpush.msra.mxu0 %v94
    %897 = vmatpush.msra.mxu0 %v93
    %898 = vmatpush.msra.mxu0 %v92
    %899 = vmatmul.f32.gmra.mxu0 %v840
    %v900 = vpop.f32.mrf.mxu0
    %v901 = vadd.f32 %v872, %v900
    %902 = vmatmul.f32.gmra.mxu0 %v843
    %v903 = vpop.f32.mrf.mxu0
    %v904 = vadd.f32 %v875, %v903
    %905 = vmatmul.f32.gmra.mxu0 %v846
    %v906 = vpop.f32.mrf.mxu0
    %v907 = vadd.f32 %v878, %v906
    %908 = vmatmul.f32.gmra.mxu0 %v849
    %v909 = vpop.f32.mrf.mxu0
    %v910 = vadd.f32 %v881, %v909
    %911 = vdwg.mxu0
    %v912 = vtanh.pop %v901
    %v913 = vtanh.pop %v904
    %v914 = vtanh.pop %v907
    %v915 = vtanh.pop %v910
    %916 = vrot.lane.b32.xlu0 %v100, 32
    %v917 = vpop.permute.xlu0 %916
    %918 = vrot.lane.b32.xlu0 %v101, 32
    %v919 = vpop.permute.xlu0 %918
    %920 = vrot.lane.b32.xlu0 %v102, 32
    %v921 = vpop.permute.xlu0 %920
    %922 = vrot.lane.b32.xlu0 %v103, 32
    %v923 = vpop.permute.xlu0 %922
    %v928 = vmul.f32 %v474, %v917
    %v929 = vmul.f32 %v489, %v919
    %v930 = vmul.f32 %v504, %v921
    %v931 = vmul.f32 %v519, %v923
    %v932 = vsub.f32 1.0, %v474
    %v933 = vsub.f32 1.0, %v489
    %v934 = vsub.f32 1.0, %v504
    %v935 = vsub.f32 1.0, %v519
    %940 = vrot.lane.b32.xlu0 %v912, 32
    %v941 = vpop.permute.xlu0 %940
    %942 = vrot.lane.b32.xlu0 %v913, 32
    %v943 = vpop.permute.xlu0 %942
    %944 = vrot.lane.b32.xlu0 %v914, 32
    %v945 = vpop.permute.xlu0 %944
    %946 = vrot.lane.b32.xlu0 %v915, 32
    %v947 = vpop.permute.xlu0 %946
    %v952 = vmul.f32 %v932, %v941
    %v953 = vmul.f32 %v933, %v943
    %v954 = vmul.f32 %v934, %v945
    %v955 = vmul.f32 %v935, %v947
    %v956 = vadd.f32 %v928, %v952
    %v957 = vadd.f32 %v929, %v953
    %v958 = vadd.f32 %v930, %v954
    %v959 = vadd.f32 %v931, %v955
    %964 = vrot.lane.b32.xlu0 %v956, 96
    %v965 = vpop.permute.xlu0 %964
    %966 = vrot.lane.b32.xlu0 %v957, 96
    %v967 = vpop.permute.xlu0 %966
    %968 = vrot.lane.b32.xlu0 %v958, 96
    %v969 = vpop.permute.xlu0 %968
    %970 = vrot.lane.b32.xlu0 %v959, 96
    %v971 = vpop.permute.xlu0 %970
    %976 = vst.msk [vmem:[#allocation2] sm:$0xff] %vm125, %v965
    %977 = vst.msk [vmem:[#allocation2 + $0x8] sm:$0xff] %vm125, %v967
    %978 = vst.msk [vmem:[#allocation2 + $0x10] sm:$0xff] %vm125, %v969
    %979 = vst.msk [vmem:[#allocation2 + $0x18] sm:$0xff] %vm125, %v971
    %v980 = vld [vmem:[%s7] sm:$0xff]
    %v981 = vld [vmem:[%s7 + $0x8] sm:$0xff]
    %v982 = vld [vmem:[%s7 + $0x10] sm:$0xff]
    %v983 = vld [vmem:[%s7 + $0x18] sm:$0xff]
    %v984 = vld [vmem:[%s7 + $0x20] sm:$0xff]
    %v985 = vld [vmem:[%s7 + $0x28] sm:$0xff]
    %v986 = vld [vmem:[%s7 + $0x30] sm:$0xff]
    %v987 = vld [vmem:[%s7 + $0x38] sm:$0xff]
    %v988 = vld [vmem:[%s7 + $0x40] sm:$0xff]
    %v989 = vld [vmem:[%s7 + $0x48] sm:$0xff]
    %v990 = vld [vmem:[%s7 + $0x50] sm:$0xff]
    %v991 = vld [vmem:[%s7 + $0x58] sm:$0xff]
    %v992 = vld [vmem:[%s7 + $0x60] sm:$0xff]
    %v993 = vld [vmem:[%s7 + $0x68] sm:$0xff]
    %v994 = vld [vmem:[%s7 + $0x70] sm:$0xff]
    %v995 = vld [vmem:[%s7 + $0x78] sm:$0xff]
    %v996 = vld [vmem:[%s7 + $0x80] sm:$0xff]
    %v997 = vld [vmem:[%s7 + $0x88] sm:$0xff]
    %v998 = vld [vmem:[%s7 + $0x90] sm:$0xff]
    %v999 = vld [vmem:[%s7 + $0x98] sm:$0xff]
    %v1000 = vld [vmem:[%s7 + $0xa0] sm:$0xff]
    %v1001 = vld [vmem:[%s7 + $0xa8] sm:$0xff]
    %v1002 = vld [vmem:[%s7 + $0xb0] sm:$0xff]
    %v1003 = vld [vmem:[%s7 + $0xb8] sm:$0xff]
    %v1004 = vld [vmem:[%s7 + $0xc0] sm:$0xff]
    %v1005 = vld [vmem:[%s7 + $0xc8] sm:$0xff]
    %v1006 = vld [vmem:[%s7 + $0xd0] sm:$0xff]
    %v1007 = vld [vmem:[%s7 + $0xd8] sm:$0xff]
    %v1008 = vld [vmem:[%s7 + $0xe0] sm:$0xff]
    %v1009 = vld [vmem:[%s7 + $0xe8] sm:$0xff]
    %v1010 = vld [vmem:[%s7 + $0xf0] sm:$0xff]
    %v1011 = vld [vmem:[%s7 + $0xf8] sm:$0xff]
    %v1012 = vld [vmem:[%s7 + $0x100] sm:$0xff]
    %v1013 = vld [vmem:[%s7 + $0x108] sm:$0xff]
    %v1014 = vld [vmem:[%s7 + $0x110] sm:$0xff]
    %v1015 = vld [vmem:[%s7 + $0x118] sm:$0xff]
    %v1016 = vld [vmem:[%s7 + $0x120] sm:$0xff]
    %v1017 = vld [vmem:[%s7 + $0x128] sm:$0xff]
    %v1018 = vld [vmem:[%s7 + $0x130] sm:$0xff]
    %v1019 = vld [vmem:[%s7 + $0x138] sm:$0xff]
    %v1020 = vld [vmem:[%s8] sm:$0x1]
    %v1021 = vld [vmem:[%s9] sm:$0xff]
    %v1022 = vld [vmem:[%s9 + $0x8] sm:$0xff]
    %v1023 = vld [vmem:[%s9 + $0x10] sm:$0xff]
    %v1024 = vld [vmem:[%s9 + $0x18] sm:$0xff]
    %v1025 = vld [vmem:[%s9 + $0x20] sm:$0xff]
    %v1026 = vld [vmem:[%s9 + $0x28] sm:$0xff]
    %v1027 = vld [vmem:[%s9 + $0x30] sm:$0xff]
    %v1028 = vld [vmem:[%s9 + $0x38] sm:$0xff]
    %v1029 = vld [vmem:[%s9 + $0x40] sm:$0xff]
    %v1030 = vld [vmem:[%s9 + $0x48] sm:$0xff]
    %v1031 = vld [vmem:[%s9 + $0x50] sm:$0xff]
    %v1032 = vld [vmem:[%s9 + $0x58] sm:$0xff]
    %v1033 = vld [vmem:[%s9 + $0x60] sm:$0xff]
    %v1034 = vld [vmem:[%s9 + $0x68] sm:$0xff]
    %v1035 = vld [vmem:[%s9 + $0x70] sm:$0xff]
    %v1036 = vld [vmem:[%s9 + $0x78] sm:$0xff]
    %v1037 = vld [vmem:[%s9 + $0x80] sm:$0xff]
    %v1038 = vld [vmem:[%s9 + $0x88] sm:$0xff]
    %v1039 = vld [vmem:[%s9 + $0x90] sm:$0xff]
    %v1040 = vld [vmem:[%s9 + $0x98] sm:$0xff]
    %v1041 = vld [vmem:[%s9 + $0xa0] sm:$0xff]
    %v1042 = vld [vmem:[%s9 + $0xa8] sm:$0xff]
    %v1043 = vld [vmem:[%s9 + $0xb0] sm:$0xff]
    %v1044 = vld [vmem:[%s9 + $0xb8] sm:$0xff]
    %v1045 = vld [vmem:[%s9 + $0xc0] sm:$0xff]
    %v1046 = vld [vmem:[%s9 + $0xc8] sm:$0xff]
    %v1047 = vld [vmem:[%s9 + $0xd0] sm:$0xff]
    %v1048 = vld [vmem:[%s9 + $0xd8] sm:$0xff]
    %v1049 = vld [vmem:[%s9 + $0xe0] sm:$0xff]
    %v1050 = vld [vmem:[%s9 + $0xe8] sm:$0xff]
    %v1051 = vld [vmem:[%s9 + $0xf0] sm:$0xff]
    %v1052 = vld [vmem:[%s9 + $0xf8] sm:$0xff]
    %v1053 = vld [vmem:[%s9 + $0x100] sm:$0xff]
    %v1054 = vld [vmem:[%s9 + $0x108] sm:$0xff]
    %v1055 = vld [vmem:[%s9 + $0x110] sm:$0xff]
    %v1056 = vld [vmem:[%s9 + $0x118] sm:$0xff]
    %v1057 = vld [vmem:[%s9 + $0x120] sm:$0xff]
    %v1058 = vld [vmem:[%s9 + $0x128] sm:$0xff]
    %v1059 = vld [vmem:[%s9 + $0x130] sm:$0xff]
    %v1060 = vld [vmem:[%s9 + $0x138] sm:$0xff]
    %v1061 = vld [vmem:[%s10] sm:$0x1]
    %s1062 = scalar_lea.vmem %s1, 32
    %v1063 = vld [vmem:[%s1062] sm:$0xff]
    %v1064 = vld [vmem:[%s1062 + $0x8] sm:$0xff]
    %v1065 = vld [vmem:[%s1062 + $0x10] sm:$0xff]
    %v1066 = vld [vmem:[%s1062 + $0x18] sm:$0xff]
    %1071 = vrot.lane.b32.xlu0 %v1063, 32
    %v1072 = vpop.permute.xlu0 %1071
    %1073 = vrot.lane.b32.xlu0 %v1064, 32
    %v1074 = vpop.permute.xlu0 %1073
    %1075 = vrot.lane.b32.xlu0 %v1065, 32
    %v1076 = vpop.permute.xlu0 %1075
    %1077 = vrot.lane.b32.xlu0 %v1066, 32
    %v1078 = vpop.permute.xlu0 %1077
    %v1083 = vsel %vm125, %v965, %v1072
    %v1084 = vsel %vm125, %v967, %v1074
    %v1085 = vsel %vm125, %v969, %v1076
    %v1086 = vsel %vm125, %v971, %v1078
    %1087 = vmatpush.msra.mxu0 0.0
    %1088 = vmatpush.msra.mxu0 0.0
    %1089 = vmatpush.msra.mxu0 0.0
    %1090 = vmatpush.msra.mxu0 0.0
    %1091 = vmatpush.msra.mxu0 0.0
    %1092 = vmatpush.msra.mxu0 0.0
    %1093 = vmatpush.msra.mxu0 0.0
    %1094 = vmatpush.msra.mxu0 0.0
    %1095 = vmatpush.msra.mxu0 0.0
    %1096 = vmatpush.msra.mxu0 0.0
    %1097 = vmatpush.msra.mxu0 0.0
    %1098 = vmatpush.msra.mxu0 0.0
    %1099 = vmatpush.msra.mxu0 %v1086
    %1100 = vmatpush.msra.mxu0 %v1085
    %1101 = vmatpush.msra.mxu0 %v1084
    %1102 = vmatpush.msra.mxu0 %v1083
    %1103 = vmatmul.f32.gmra.mxu0 %v127
    %v1104 = vpop.f32.mrf.mxu0
    %v1105 = vadd.f32 0.0, %v1104
    %1106 = vmatmul.f32.gmra.mxu0 %v130
    %v1107 = vpop.f32.mrf.mxu0
    %v1108 = vadd.f32 0.0, %v1107
    %1109 = vmatmul.f32.gmra.mxu0 %v133
    %v1110 = vpop.f32.mrf.mxu0
    %v1111 = vadd.f32 0.0, %v1110
    %1112 = vmatmul.f32.gmra.mxu0 %v136
    %v1113 = vpop.f32.mrf.mxu0
    %v1114 = vadd.f32 0.0, %v1113
    %1115 = vdwg.mxu0
    %1116 = vmatpush.msra.mxu0 0.0
    %1117 = vmatpush.msra.mxu0 0.0
    %1118 = vmatpush.msra.mxu0 0.0
    %1119 = vmatpush.msra.mxu0 0.0
    %1120 = vmatpush.msra.mxu0 0.0
    %1121 = vmatpush.msra.mxu0 0.0
    %1122 = vmatpush.msra.mxu0 0.0
    %1123 = vmatpush.msra.mxu0 0.0
    %1124 = vmatpush.msra.mxu0 0.0
    %1125 = vmatpush.msra.mxu0 0.0
    %1126 = vmatpush.msra.mxu0 0.0
    %1127 = vmatpush.msra.mxu0 0.0
    %1128 = vmatpush.msra.mxu0 %v1114
    %1129 = vmatpush.msra.mxu0 %v1111
    %1130 = vmatpush.msra.mxu0 %v1108
    %1131 = vmatpush.msra.mxu0 %v1105
    %1132 = vmatmul.f32.gmra.mxu0 %v127
    %v1133 = vpop.f32.mrf.mxu0
    %v1134 = vadd.f32 0.0, %v1133
    %1135 = vmatmul.f32.gmra.mxu0 %v130
    %v1136 = vpop.f32.mrf.mxu0
    %v1137 = vadd.f32 0.0, %v1136
    %1138 = vmatmul.f32.gmra.mxu0 %v133
    %v1139 = vpop.f32.mrf.mxu0
    %v1140 = vadd.f32 0.0, %v1139
    %1141 = vmatmul.f32.gmra.mxu0 %v136
    %v1142 = vpop.f32.mrf.mxu0
    %v1143 = vadd.f32 0.0, %v1142
    %1144 = vdwg.mxu0
    %v1145 = vmul.f32 %v1134, 2.0
    %v1146 = vmul.f32 %v1137, 2.0
    %v1147 = vmul.f32 %v1140, 2.0
    %v1148 = vmul.f32 %v1143, 2.0
    %v1149 = vsub.f32 %v1145, %v1083
    %v1150 = vsub.f32 %v1146, %v1084
    %v1151 = vsub.f32 %v1147, %v1085
    %v1152 = vsub.f32 %v1148, %v1086
    %1153 = vmatpush.msra.mxu0 0.0
    %1154 = vmatpush.msra.mxu0 0.0
    %1155 = vmatpush.msra.mxu0 0.0
    %1156 = vmatpush.msra.mxu0 0.0
    %1157 = vmatpush.msra.mxu0 0.0
    %1158 = vmatpush.msra.mxu0 0.0
    %1159 = vmatpush.msra.mxu0 0.0
    %1160 = vmatpush.msra.mxu0 0.0
    %1161 = vmatpush.msra.mxu0 0.0
    %1162 = vmatpush.msra.mxu0 0.0
    %1163 = vmatpush.msra.mxu0 0.0
    %1164 = vmatpush.msra.mxu0 0.0
    %1165 = vmatpush.msra.mxu0 %v1114
    %1166 = vmatpush.msra.mxu0 %v1111
    %1167 = vmatpush.msra.mxu0 %v1108
    %1168 = vmatpush.msra.mxu0 %v1105
    %1169 = vmatmul.f32.gmra.mxu0 %v205
    %v1170 = vpop.f32.mrf.mxu0
    %v1171 = vadd.f32 0.0, %v1170
    %1172 = vmatmul.f32.gmra.mxu0 %v208
    %v1173 = vpop.f32.mrf.mxu0
    %v1174 = vadd.f32 0.0, %v1173
    %1175 = vmatmul.f32.gmra.mxu0 %v211
    %v1176 = vpop.f32.mrf.mxu0
    %v1177 = vadd.f32 0.0, %v1176
    %1178 = vmatmul.f32.gmra.mxu0 %v214
    %v1179 = vpop.f32.mrf.mxu0
    %v1180 = vadd.f32 0.0, %v1179
    %1181 = vdwg.mxu0
    %1182 = vmatpush.msra.mxu0 0.0
    %1183 = vmatpush.msra.mxu0 0.0
    %1184 = vmatpush.msra.mxu0 0.0
    %1185 = vmatpush.msra.mxu0 0.0
    %1186 = vmatpush.msra.mxu0 0.0
    %1187 = vmatpush.msra.mxu0 0.0
    %1188 = vmatpush.msra.mxu0 0.0
    %1189 = vmatpush.msra.mxu0 0.0
    %1190 = vmatpush.msra.mxu0 0.0
    %1191 = vmatpush.msra.mxu0 0.0
    %1192 = vmatpush.msra.mxu0 0.0
    %1193 = vmatpush.msra.mxu0 0.0
    %1194 = vmatpush.msra.mxu0 %v1180
    %1195 = vmatpush.msra.mxu0 %v1177
    %1196 = vmatpush.msra.mxu0 %v1174
    %1197 = vmatpush.msra.mxu0 %v1171
    %1198 = vmatmul.f32.gmra.mxu0 %v205
    %v1199 = vpop.f32.mrf.mxu0
    %v1200 = vadd.f32 0.0, %v1199
    %1201 = vmatmul.f32.gmra.mxu0 %v208
    %v1202 = vpop.f32.mrf.mxu0
    %v1203 = vadd.f32 0.0, %v1202
    %1204 = vmatmul.f32.gmra.mxu0 %v211
    %v1205 = vpop.f32.mrf.mxu0
    %v1206 = vadd.f32 0.0, %v1205
    %1207 = vmatmul.f32.gmra.mxu0 %v214
    %v1208 = vpop.f32.mrf.mxu0
    %v1209 = vadd.f32 0.0, %v1208
    %1210 = vdwg.mxu0
    %v1211 = vmul.f32 %v1200, 2.0
    %v1212 = vmul.f32 %v1203, 2.0
    %v1213 = vmul.f32 %v1206, 2.0
    %v1214 = vmul.f32 %v1209, 2.0
    %v1215 = vsub.f32 %v1211, %v1105
    %v1216 = vsub.f32 %v1212, %v1108
    %v1217 = vsub.f32 %v1213, %v1111
    %v1218 = vsub.f32 %v1214, %v1114
    %1223 = vrot.lane.b32.xlu0 %v1105, 64
    %v1224 = vpop.permute.xlu0 %1223
    %1225 = vrot.lane.b32.xlu0 %v1108, 64
    %v1226 = vpop.permute.xlu0 %1225
    %1227 = vrot.lane.b32.xlu0 %v1111, 64
    %v1228 = vpop.permute.xlu0 %1227
    %1229 = vrot.lane.b32.xlu0 %v1114, 64
    %v1230 = vpop.permute.xlu0 %1229
    %1239 = vrot.lane.b32.xlu0 %v1171, 64
    %v1240 = vpop.permute.xlu0 %1239
    %1241 = vrot.lane.b32.xlu0 %v1174, 64
    %v1242 = vpop.permute.xlu0 %1241
    %1243 = vrot.lane.b32.xlu0 %v1177, 64
    %v1244 = vpop.permute.xlu0 %1243
    %1245 = vrot.lane.b32.xlu0 %v1180, 64
    %v1246 = vpop.permute.xlu0 %1245
    %vm1251 = vcmask 523264
    %v1252 = vsel %vm1251, %v1083, %v1224
    %v1253 = vsel %vm1251, %v1084, %v1226
    %v1254 = vsel %vm1251, %v1085, %v1228
    %v1255 = vsel %vm1251, %v1086, %v1230
    %v1256 = vsel %vm1251, %v1149, %v1240
    %v1257 = vsel %vm1251, %v1150, %v1242
    %v1258 = vsel %vm1251, %v1151, %v1244
    %v1259 = vsel %vm1251, %v1152, %v1246
    %v1261 = vperm.slane %v1020, 0
    %v1264 = vsel %vm1251, %v1215, 0
    %v1267 = vsel %vm1251, %v1216, 0
    %v1270 = vsel %vm1251, %v1217, 0
    %v1273 = vsel %vm1251, %v1218, 0
    %1275 = vmatpush.msra.mxu0 %v995
    %1276 = vmatpush.msra.mxu0 %v994
    %1277 = vmatpush.msra.mxu0 %v993
    %1278 = vmatpush.msra.mxu0 %v992
    %1279 = vmatpush.msra.mxu0 %v991
    %1280 = vmatpush.msra.mxu0 %v990
    %1281 = vmatpush.msra.mxu0 %v989
    %1282 = vmatpush.msra.mxu0 %v988
    %1283 = vmatpush.msra.mxu0 %v987
    %1284 = vmatpush.msra.mxu0 %v986
    %1285 = vmatpush.msra.mxu0 %v985
    %1286 = vmatpush.msra.mxu0 %v984
    %1287 = vmatpush.msra.mxu0 %v983
    %1288 = vmatpush.msra.mxu0 %v982
    %1289 = vmatpush.msra.mxu0 %v981
    %1290 = vmatpush.msra.mxu0 %v980
    %1291 = vmatmul.f32.gmra.mxu0 %v1252
    %v1292 = vpop.f32.mrf.mxu0
    %v1293 = vadd.f32 %v1261, %v1292
    %1294 = vmatmul.f32.gmra.mxu0 %v1253
    %v1295 = vpop.f32.mrf.mxu0
    %v1296 = vadd.f32 %v1261, %v1295
    %1297 = vmatmul.f32.gmra.mxu0 %v1254
    %v1298 = vpop.f32.mrf.mxu0
    %v1299 = vadd.f32 %v1261, %v1298
    %1300 = vmatmul.f32.gmra.mxu0 %v1255
    %v1301 = vpop.f32.mrf.mxu0
    %v1302 = vadd.f32 %v1261, %v1301
    %1303 = vdwg.mxu0
    %1304 = vmatpush.msra.mxu0 %v1011
    %1305 = vmatpush.msra.mxu0 %v1010
    %1306 = vmatpush.msra.mxu0 %v1009
    %1307 = vmatpush.msra.mxu0 %v1008
    %1308 = vmatpush.msra.mxu0 %v1007
    %1309 = vmatpush.msra.mxu0 %v1006
    %1310 = vmatpush.msra.mxu0 %v1005
    %1311 = vmatpush.msra.mxu0 %v1004
    %1312 = vmatpush.msra.mxu0 %v1003
    %1313 = vmatpush.msra.mxu0 %v1002
    %1314 = vmatpush.msra.mxu0 %v1001
    %1315 = vmatpush.msra.mxu0 %v1000
    %1316 = vmatpush.msra.mxu0 %v999
    %1317 = vmatpush.msra.mxu0 %v998
    %1318 = vmatpush.msra.mxu0 %v997
    %1319 = vmatpush.msra.mxu0 %v996
    %1320 = vmatmul.f32.gmra.mxu0 %v1256
    %v1321 = vpop.f32.mrf.mxu0
    %v1322 = vadd.f32 %v1293, %v1321
    %1323 = vmatmul.f32.gmra.mxu0 %v1257
    %v1324 = vpop.f32.mrf.mxu0
    %v1325 = vadd.f32 %v1296, %v1324
    %1326 = vmatmul.f32.gmra.mxu0 %v1258
    %v1327 = vpop.f32.mrf.mxu0
    %v1328 = vadd.f32 %v1299, %v1327
    %1329 = vmatmul.f32.gmra.mxu0 %v1259
    %v1330 = vpop.f32.mrf.mxu0
    %v1331 = vadd.f32 %v1302, %v1330
    %1332 = vdwg.mxu0
    %1333 = vmatpush.msra.mxu0 0.0
    %1334 = vmatpush.msra.mxu0 0.0
    %1335 = vmatpush.msra.mxu0 0.0
    %1336 = vmatpush.msra.mxu0 0.0
    %1337 = vmatpush.msra.mxu0 0.0
    %1338 = vmatpush.msra.mxu0 0.0
    %1339 = vmatpush.msra.mxu0 0.0
    %1340 = vmatpush.msra.mxu0 0.0
    %1341 = vmatpush.msra.mxu0 %v1019
    %1342 = vmatpush.msra.mxu0 %v1018
    %1343 = vmatpush.msra.mxu0 %v1017
    %1344 = vmatpush.msra.mxu0 %v1016
    %1345 = vmatpush.msra.mxu0 %v1015
    %1346 = vmatpush.msra.mxu0 %v1014
    %1347 = vmatpush.msra.mxu0 %v1013
    %1348 = vmatpush.msra.mxu0 %v1012
    %1349 = vmatmul.f32.gmra.mxu0 %v1264
    %v1350 = vpop.f32.mrf.mxu0
    %v1351 = vadd.f32 %v1322, %v1350
    %1352 = vmatmul.f32.gmra.mxu0 %v1267
    %v1353 = vpop.f32.mrf.mxu0
    %v1354 = vadd.f32 %v1325, %v1353
    %1355 = vmatmul.f32.gmra.mxu0 %v1270
    %v1356 = vpop.f32.mrf.mxu0
    %v1357 = vadd.f32 %v1328, %v1356
    %1358 = vmatmul.f32.gmra.mxu0 %v1273
    %v1359 = vpop.f32.mrf.mxu0
    %v1360 = vadd.f32 %v1331, %v1359
    %1361 = vdwg.mxu0
    %v1362 = vxor.u32 %v1351, 2147483648
    %v1363 = vxor.u32 %v1354, 2147483648
    %v1364 = vxor.u32 %v1357, 2147483648
    %v1365 = vxor.u32 %v1360, 2147483648
    %v1366 = vmul.f32 %v1362, 1.442695
    %v1367 = vpow.pop %v1366
    %v1368 = vmul.f32 %v1363, 1.442695
    %v1369 = vpow.pop %v1368
    %v1370 = vmul.f32 %v1364, 1.442695
    %v1371 = vpow.pop %v1370
    %v1372 = vmul.f32 %v1365, 1.442695
    %v1373 = vpow.pop %v1372
    %v1374 = vadd.f32 %v1367, 1.0
    %v1375 = vadd.f32 %v1369, 1.0
    %v1376 = vadd.f32 %v1371, 1.0
    %v1377 = vadd.f32 %v1373, 1.0
    %v1378 = vrcp.pop %v1374
    %v1379 = vmul.f32 %v1374, %v1378
    %v1380 = vsub.f32 1.0, %v1379
    %v1381 = vmul.f32 %v1378, %v1380
    %v1382 = vadd.f32 %v1378, %v1381
    %vm1383 = vweird.f32 %v1374
    %vm1384 = vweird.f32 %v1378
    %vm1385 = vmor %vm1383, %vm1384
    %v1386 = vsel %vm1385, %v1378, %v1382
    %v1387 = vand.u32 2147483647, %v1374
    %vm1388 = vcmp.eq.f32.partialorder %v1387, 8.507059e+37
    %v1389 = vand.u32 %v1374, 2147483648
    %v1390 = vor.u32 1.1754944e-38, %v1389
    %v1391 = vsel %vm1388, %v1390, %v1386
    %v1392 = vmul.f32 1.0, %v1391
    %v1393 = vrcp.pop %v1375
    %v1394 = vmul.f32 %v1375, %v1393
    %v1395 = vsub.f32 1.0, %v1394
    %v1396 = vmul.f32 %v1393, %v1395
    %v1397 = vadd.f32 %v1393, %v1396
    %vm1398 = vweird.f32 %v1375
    %vm1399 = vweird.f32 %v1393
    %vm1400 = vmor %vm1398, %vm1399
    %v1401 = vsel %vm1400, %v1393, %v1397
    %v1402 = vand.u32 2147483647, %v1375
    %vm1403 = vcmp.eq.f32.partialorder %v1402, 8.507059e+37
    %v1404 = vand.u32 %v1375, 2147483648
    %v1405 = vor.u32 1.1754944e-38, %v1404
    %v1406 = vsel %vm1403, %v1405, %v1401
    %v1407 = vmul.f32 1.0, %v1406
    %v1408 = vrcp.pop %v1376
    %v1409 = vmul.f32 %v1376, %v1408
    %v1410 = vsub.f32 1.0, %v1409
    %v1411 = vmul.f32 %v1408, %v1410
    %v1412 = vadd.f32 %v1408, %v1411
    %vm1413 = vweird.f32 %v1376
    %vm1414 = vweird.f32 %v1408
    %vm1415 = vmor %vm1413, %vm1414
    %v1416 = vsel %vm1415, %v1408, %v1412
    %v1417 = vand.u32 2147483647, %v1376
    %vm1418 = vcmp.eq.f32.partialorder %v1417, 8.507059e+37
    %v1419 = vand.u32 %v1376, 2147483648
    %v1420 = vor.u32 1.1754944e-38, %v1419
    %v1421 = vsel %vm1418, %v1420, %v1416
    %v1422 = vmul.f32 1.0, %v1421
    %v1423 = vrcp.pop %v1377
    %v1424 = vmul.f32 %v1377, %v1423
    %v1425 = vsub.f32 1.0, %v1424
    %v1426 = vmul.f32 %v1423, %v1425
    %v1427 = vadd.f32 %v1423, %v1426
    %vm1428 = vweird.f32 %v1377
    %vm1429 = vweird.f32 %v1423
    %vm1430 = vmor %vm1428, %vm1429
    %v1431 = vsel %vm1430, %v1423, %v1427
    %v1432 = vand.u32 2147483647, %v1377
    %vm1433 = vcmp.eq.f32.partialorder %v1432, 8.507059e+37
    %v1434 = vand.u32 %v1377, 2147483648
    %v1435 = vor.u32 1.1754944e-38, %v1434
    %v1436 = vsel %vm1433, %v1435, %v1431
    %v1437 = vmul.f32 1.0, %v1436
    %v1438 = vmul.f32 %v1392, %v1063
    %v1439 = vmul.f32 %v1407, %v1064
    %v1440 = vmul.f32 %v1422, %v1065
    %v1441 = vmul.f32 %v1437, %v1066
    %1442 = vmatpush.msra.mxu0 0.0
    %1443 = vmatpush.msra.mxu0 0.0
    %1444 = vmatpush.msra.mxu0 0.0
    %1445 = vmatpush.msra.mxu0 0.0
    %1446 = vmatpush.msra.mxu0 0.0
    %1447 = vmatpush.msra.mxu0 0.0
    %1448 = vmatpush.msra.mxu0 0.0
    %1449 = vmatpush.msra.mxu0 0.0
    %1450 = vmatpush.msra.mxu0 0.0
    %1451 = vmatpush.msra.mxu0 0.0
    %1452 = vmatpush.msra.mxu0 0.0
    %1453 = vmatpush.msra.mxu0 0.0
    %1454 = vmatpush.msra.mxu0 %v1441
    %1455 = vmatpush.msra.mxu0 %v1440
    %1456 = vmatpush.msra.mxu0 %v1439
    %1457 = vmatpush.msra.mxu0 %v1438
    %1458 = vmatmul.f32.gmra.mxu0 %v127
    %v1459 = vpop.f32.mrf.mxu0
    %v1460 = vadd.f32 0.0, %v1459
    %1461 = vmatmul.f32.gmra.mxu0 %v130
    %v1462 = vpop.f32.mrf.mxu0
    %v1463 = vadd.f32 0.0, %v1462
    %1464 = vmatmul.f32.gmra.mxu0 %v133
    %v1465 = vpop.f32.mrf.mxu0
    %v1466 = vadd.f32 0.0, %v1465
    %1467 = vmatmul.f32.gmra.mxu0 %v136
    %v1468 = vpop.f32.mrf.mxu0
    %v1469 = vadd.f32 0.0, %v1468
    %1470 = vdwg.mxu0
    %1471 = vmatpush.msra.mxu0 0.0
    %1472 = vmatpush.msra.mxu0 0.0
    %1473 = vmatpush.msra.mxu0 0.0
    %1474 = vmatpush.msra.mxu0 0.0
    %1475 = vmatpush.msra.mxu0 0.0
    %1476 = vmatpush.msra.mxu0 0.0
    %1477 = vmatpush.msra.mxu0 0.0
    %1478 = vmatpush.msra.mxu0 0.0
    %1479 = vmatpush.msra.mxu0 0.0
    %1480 = vmatpush.msra.mxu0 0.0
    %1481 = vmatpush.msra.mxu0 0.0
    %1482 = vmatpush.msra.mxu0 0.0
    %1483 = vmatpush.msra.mxu0 %v1469
    %1484 = vmatpush.msra.mxu0 %v1466
    %1485 = vmatpush.msra.mxu0 %v1463
    %1486 = vmatpush.msra.mxu0 %v1460
    %1487 = vmatmul.f32.gmra.mxu0 %v127
    %v1488 = vpop.f32.mrf.mxu0
    %v1489 = vadd.f32 0.0, %v1488
    %1490 = vmatmul.f32.gmra.mxu0 %v130
    %v1491 = vpop.f32.mrf.mxu0
    %v1492 = vadd.f32 0.0, %v1491
    %1493 = vmatmul.f32.gmra.mxu0 %v133
    %v1494 = vpop.f32.mrf.mxu0
    %v1495 = vadd.f32 0.0, %v1494
    %1496 = vmatmul.f32.gmra.mxu0 %v136
    %v1497 = vpop.f32.mrf.mxu0
    %v1498 = vadd.f32 0.0, %v1497
    %1499 = vdwg.mxu0
    %v1500 = vmul.f32 %v1489, 2.0
    %v1501 = vmul.f32 %v1492, 2.0
    %v1502 = vmul.f32 %v1495, 2.0
    %v1503 = vmul.f32 %v1498, 2.0
    %v1504 = vsub.f32 %v1500, %v1438
    %v1505 = vsub.f32 %v1501, %v1439
    %v1506 = vsub.f32 %v1502, %v1440
    %v1507 = vsub.f32 %v1503, %v1441
    %1508 = vmatpush.msra.mxu0 0.0
    %1509 = vmatpush.msra.mxu0 0.0
    %1510 = vmatpush.msra.mxu0 0.0
    %1511 = vmatpush.msra.mxu0 0.0
    %1512 = vmatpush.msra.mxu0 0.0
    %1513 = vmatpush.msra.mxu0 0.0
    %1514 = vmatpush.msra.mxu0 0.0
    %1515 = vmatpush.msra.mxu0 0.0
    %1516 = vmatpush.msra.mxu0 0.0
    %1517 = vmatpush.msra.mxu0 0.0
    %1518 = vmatpush.msra.mxu0 0.0
    %1519 = vmatpush.msra.mxu0 0.0
    %1520 = vmatpush.msra.mxu0 %v1469
    %1521 = vmatpush.msra.mxu0 %v1466
    %1522 = vmatpush.msra.mxu0 %v1463
    %1523 = vmatpush.msra.mxu0 %v1460
    %1524 = vmatmul.f32.gmra.mxu0 %v205
    %v1525 = vpop.f32.mrf.mxu0
    %v1526 = vadd.f32 0.0, %v1525
    %1527 = vmatmul.f32.gmra.mxu0 %v208
    %v1528 = vpop.f32.mrf.mxu0
    %v1529 = vadd.f32 0.0, %v1528
    %1530 = vmatmul.f32.gmra.mxu0 %v211
    %v1531 = vpop.f32.mrf.mxu0
    %v1532 = vadd.f32 0.0, %v1531
    %1533 = vmatmul.f32.gmra.mxu0 %v214
    %v1534 = vpop.f32.mrf.mxu0
    %v1535 = vadd.f32 0.0, %v1534
    %1536 = vdwg.mxu0
    %1537 = vmatpush.msra.mxu0 0.0
    %1538 = vmatpush.msra.mxu0 0.0
    %1539 = vmatpush.msra.mxu0 0.0
    %1540 = vmatpush.msra.mxu0 0.0
    %1541 = vmatpush.msra.mxu0 0.0
    %1542 = vmatpush.msra.mxu0 0.0
    %1543 = vmatpush.msra.mxu0 0.0
    %1544 = vmatpush.msra.mxu0 0.0
    %1545 = vmatpush.msra.mxu0 0.0
    %1546 = vmatpush.msra.mxu0 0.0
    %1547 = vmatpush.msra.mxu0 0.0
    %1548 = vmatpush.msra.mxu0 0.0
    %1549 = vmatpush.msra.mxu0 %v1535
    %1550 = vmatpush.msra.mxu0 %v1532
    %1551 = vmatpush.msra.mxu0 %v1529
    %1552 = vmatpush.msra.mxu0 %v1526
    %1553 = vmatmul.f32.gmra.mxu0 %v205
    %v1554 = vpop.f32.mrf.mxu0
    %v1555 = vadd.f32 0.0, %v1554
    %1556 = vmatmul.f32.gmra.mxu0 %v208
    %v1557 = vpop.f32.mrf.mxu0
    %v1558 = vadd.f32 0.0, %v1557
    %1559 = vmatmul.f32.gmra.mxu0 %v211
    %v1560 = vpop.f32.mrf.mxu0
    %v1561 = vadd.f32 0.0, %v1560
    %1562 = vmatmul.f32.gmra.mxu0 %v214
    %v1563 = vpop.f32.mrf.mxu0
    %v1564 = vadd.f32 0.0, %v1563
    %1565 = vdwg.mxu0
    %v1566 = vmul.f32 %v1555, 2.0
    %v1567 = vmul.f32 %v1558, 2.0
    %v1568 = vmul.f32 %v1561, 2.0
    %v1569 = vmul.f32 %v1564, 2.0
    %v1570 = vsub.f32 %v1566, %v1460
    %v1571 = vsub.f32 %v1567, %v1463
    %v1572 = vsub.f32 %v1568, %v1466
    %v1573 = vsub.f32 %v1569, %v1469
    %1578 = vrot.lane.b32.xlu0 %v1438, 32
    %v1579 = vpop.permute.xlu0 %1578
    %1580 = vrot.lane.b32.xlu0 %v1439, 32
    %v1581 = vpop.permute.xlu0 %1580
    %1582 = vrot.lane.b32.xlu0 %v1440, 32
    %v1583 = vpop.permute.xlu0 %1582
    %1584 = vrot.lane.b32.xlu0 %v1441, 32
    %v1585 = vpop.permute.xlu0 %1584
    %v1590 = vsel %vm125, %v1083, %v1579
    %v1591 = vsel %vm125, %v1084, %v1581
    %v1592 = vsel %vm125, %v1085, %v1583
    %v1593 = vsel %vm125, %v1086, %v1585
    %1598 = vrot.lane.b32.xlu0 %v1460, 32
    %v1599 = vpop.permute.xlu0 %1598
    %1600 = vrot.lane.b32.xlu0 %v1463, 32
    %v1601 = vpop.permute.xlu0 %1600
    %1602 = vrot.lane.b32.xlu0 %v1466, 32
    %v1603 = vpop.permute.xlu0 %1602
    %1604 = vrot.lane.b32.xlu0 %v1469, 32
    %v1605 = vpop.permute.xlu0 %1604
    %v1610 = vsel %vm125, %v1105, %v1599
    %v1611 = vsel %vm125, %v1108, %v1601
    %v1612 = vsel %vm125, %v1111, %v1603
    %v1613 = vsel %vm125, %v1114, %v1605
    %1618 = vrot.lane.b32.xlu0 %v1504, 32
    %v1619 = vpop.permute.xlu0 %1618
    %1620 = vrot.lane.b32.xlu0 %v1505, 32
    %v1621 = vpop.permute.xlu0 %1620
    %1622 = vrot.lane.b32.xlu0 %v1506, 32
    %v1623 = vpop.permute.xlu0 %1622
    %1624 = vrot.lane.b32.xlu0 %v1507, 32
    %v1625 = vpop.permute.xlu0 %1624
    %v1630 = vsel %vm125, %v1149, %v1619
    %v1631 = vsel %vm125, %v1150, %v1621
    %v1632 = vsel %vm125, %v1151, %v1623
    %v1633 = vsel %vm125, %v1152, %v1625
    %1638 = vrot.lane.b32.xlu0 %v1526, 32
    %v1639 = vpop.permute.xlu0 %1638
    %1640 = vrot.lane.b32.xlu0 %v1529, 32
    %v1641 = vpop.permute.xlu0 %1640
    %1642 = vrot.lane.b32.xlu0 %v1532, 32
    %v1643 = vpop.permute.xlu0 %1642
    %1644 = vrot.lane.b32.xlu0 %v1535, 32
    %v1645 = vpop.permute.xlu0 %1644
    %v1650 = vsel %vm125, %v1171, %v1639
    %v1651 = vsel %vm125, %v1174, %v1641
    %v1652 = vsel %vm125, %v1177, %v1643
    %v1653 = vsel %vm125, %v1180, %v1645
    %1658 = vrot.lane.b32.xlu0 %v1570, 32
    %v1659 = vpop.permute.xlu0 %1658
    %1660 = vrot.lane.b32.xlu0 %v1571, 32
    %v1661 = vpop.permute.xlu0 %1660
    %1662 = vrot.lane.b32.xlu0 %v1572, 32
    %v1663 = vpop.permute.xlu0 %1662
    %1664 = vrot.lane.b32.xlu0 %v1573, 32
    %v1665 = vpop.permute.xlu0 %1664
    %v1670 = vsel %vm125, %v1215, %v1659
    %v1671 = vsel %vm125, %v1216, %v1661
    %v1672 = vsel %vm125, %v1217, %v1663
    %v1673 = vsel %vm125, %v1218, %v1665
    %1678 = vrot.lane.b32.xlu0 %v1610, 64
    %v1679 = vpop.permute.xlu0 %1678
    %1680 = vrot.lane.b32.xlu0 %v1611, 64
    %v1681 = vpop.permute.xlu0 %1680
    %1682 = vrot.lane.b32.xlu0 %v1612, 64
    %v1683 = vpop.permute.xlu0 %1682
    %1684 = vrot.lane.b32.xlu0 %v1613, 64
    %v1685 = vpop.permute.xlu0 %1684
    %1694 = vrot.lane.b32.xlu0 %v1650, 64
    %v1695 = vpop.permute.xlu0 %1694
    %1696 = vrot.lane.b32.xlu0 %v1651, 64
    %v1697 = vpop.permute.xlu0 %1696
    %1698 = vrot.lane.b32.xlu0 %v1652, 64
    %v1699 = vpop.permute.xlu0 %1698
    %1700 = vrot.lane.b32.xlu0 %v1653, 64
    %v1701 = vpop.permute.xlu0 %1700
    %v1706 = vsel %vm1251, %v1590, %v1679
    %v1707 = vsel %vm1251, %v1591, %v1681
    %v1708 = vsel %vm1251, %v1592, %v1683
    %v1709 = vsel %vm1251, %v1593, %v1685
    %v1710 = vsel %vm1251, %v1630, %v1695
    %v1711 = vsel %vm1251, %v1631, %v1697
    %v1712 = vsel %vm1251, %v1632, %v1699
    %v1713 = vsel %vm1251, %v1633, %v1701
    %v1715 = vperm.slane %v1061, 0
    %v1718 = vsel %vm1251, %v1670, 0
    %v1721 = vsel %vm1251, %v1671, 0
    %v1724 = vsel %vm1251, %v1672, 0
    %v1727 = vsel %vm1251, %v1673, 0
    %1729 = vmatpush.msra.mxu0 %v1036
    %1730 = vmatpush.msra.mxu0 %v1035
    %1731 = vmatpush.msra.mxu0 %v1034
    %1732 = vmatpush.msra.mxu0 %v1033
    %1733 = vmatpush.msra.mxu0 %v1032
    %1734 = vmatpush.msra.mxu0 %v1031
    %1735 = vmatpush.msra.mxu0 %v1030
    %1736 = vmatpush.msra.mxu0 %v1029
    %1737 = vmatpush.msra.mxu0 %v1028
    %1738 = vmatpush.msra.mxu0 %v1027
    %1739 = vmatpush.msra.mxu0 %v1026
    %1740 = vmatpush.msra.mxu0 %v1025
    %1741 = vmatpush.msra.mxu0 %v1024
    %1742 = vmatpush.msra.mxu0 %v1023
    %1743 = vmatpush.msra.mxu0 %v1022
    %1744 = vmatpush.msra.mxu0 %v1021
    %1745 = vmatmul.f32.gmra.mxu0 %v1706
    %v1746 = vpop.f32.mrf.mxu0
    %v1747 = vadd.f32 %v1715, %v1746
    %1748 = vmatmul.f32.gmra.mxu0 %v1707
    %v1749 = vpop.f32.mrf.mxu0
    %v1750 = vadd.f32 %v1715, %v1749
    %1751 = vmatmul.f32.gmra.mxu0 %v1708
    %v1752 = vpop.f32.mrf.mxu0
    %v1753 = vadd.f32 %v1715, %v1752
    %1754 = vmatmul.f32.gmra.mxu0 %v1709
    %v1755 = vpop.f32.mrf.mxu0
    %v1756 = vadd.f32 %v1715, %v1755
    %1757 = vdwg.mxu0
    %1758 = vmatpush.msra.mxu0 %v1052
    %1759 = vmatpush.msra.mxu0 %v1051
    %1760 = vmatpush.msra.mxu0 %v1050
    %1761 = vmatpush.msra.mxu0 %v1049
    %1762 = vmatpush.msra.mxu0 %v1048
    %1763 = vmatpush.msra.mxu0 %v1047
    %1764 = vmatpush.msra.mxu0 %v1046
    %1765 = vmatpush.msra.mxu0 %v1045
    %1766 = vmatpush.msra.mxu0 %v1044
    %1767 = vmatpush.msra.mxu0 %v1043
    %1768 = vmatpush.msra.mxu0 %v1042
    %1769 = vmatpush.msra.mxu0 %v1041
    %1770 = vmatpush.msra.mxu0 %v1040
    %1771 = vmatpush.msra.mxu0 %v1039
    %1772 = vmatpush.msra.mxu0 %v1038
    %1773 = vmatpush.msra.mxu0 %v1037
    %1774 = vmatmul.f32.gmra.mxu0 %v1710
    %v1775 = vpop.f32.mrf.mxu0
    %v1776 = vadd.f32 %v1747, %v1775
    %1777 = vmatmul.f32.gmra.mxu0 %v1711
    %v1778 = vpop.f32.mrf.mxu0
    %v1779 = vadd.f32 %v1750, %v1778
    %1780 = vmatmul.f32.gmra.mxu0 %v1712
    %v1781 = vpop.f32.mrf.mxu0
    %v1782 = vadd.f32 %v1753, %v1781
    %1783 = vmatmul.f32.gmra.mxu0 %v1713
    %v1784 = vpop.f32.mrf.mxu0
    %v1785 = vadd.f32 %v1756, %v1784
    %1786 = vdwg.mxu0
    %1787 = vmatpush.msra.mxu0 0.0
    %1788 = vmatpush.msra.mxu0 0.0
    %1789 = vmatpush.msra.mxu0 0.0
    %1790 = vmatpush.msra.mxu0 0.0
    %1791 = vmatpush.msra.mxu0 0.0
    %1792 = vmatpush.msra.mxu0 0.0
    %1793 = vmatpush.msra.mxu0 0.0
    %1794 = vmatpush.msra.mxu0 0.0
    %1795 = vmatpush.msra.mxu0 %v1060
    %1796 = vmatpush.msra.mxu0 %v1059
    %1797 = vmatpush.msra.mxu0 %v1058
    %1798 = vmatpush.msra.mxu0 %v1057
    %1799 = vmatpush.msra.mxu0 %v1056
    %1800 = vmatpush.msra.mxu0 %v1055
    %1801 = vmatpush.msra.mxu0 %v1054
    %1802 = vmatpush.msra.mxu0 %v1053
    %1803 = vmatmul.f32.gmra.mxu0 %v1718
    %v1804 = vpop.f32.mrf.mxu0
    %v1805 = vadd.f32 %v1776, %v1804
    %1806 = vmatmul.f32.gmra.mxu0 %v1721
    %v1807 = vpop.f32.mrf.mxu0
    %v1808 = vadd.f32 %v1779, %v1807
    %1809 = vmatmul.f32.gmra.mxu0 %v1724
    %v1810 = vpop.f32.mrf.mxu0
    %v1811 = vadd.f32 %v1782, %v1810
    %1812 = vmatmul.f32.gmra.mxu0 %v1727
    %v1813 = vpop.f32.mrf.mxu0
    %v1814 = vadd.f32 %v1785, %v1813
    %1815 = vdwg.mxu0
    %v1816 = vtanh.pop %v1805
    %v1817 = vtanh.pop %v1808
    %v1818 = vtanh.pop %v1811
    %v1819 = vtanh.pop %v1814
    %v1820 = vmul.f32 %v1392, %v1072
    %v1821 = vmul.f32 %v1407, %v1074
    %v1822 = vmul.f32 %v1422, %v1076
    %v1823 = vmul.f32 %v1437, %v1078
    %v1824 = vsub.f32 1.0, %v1392
    %v1825 = vsub.f32 1.0, %v1407
    %v1826 = vsub.f32 1.0, %v1422
    %v1827 = vsub.f32 1.0, %v1437
    %1832 = vrot.lane.b32.xlu0 %v1816, 32
    %v1833 = vpop.permute.xlu0 %1832
    %1834 = vrot.lane.b32.xlu0 %v1817, 32
    %v1835 = vpop.permute.xlu0 %1834
    %1836 = vrot.lane.b32.xlu0 %v1818, 32
    %v1837 = vpop.permute.xlu0 %1836
    %1838 = vrot.lane.b32.xlu0 %v1819, 32
    %v1839 = vpop.permute.xlu0 %1838
    %v1844 = vmul.f32 %v1824, %v1833
    %v1845 = vmul.f32 %v1825, %v1835
    %v1846 = vmul.f32 %v1826, %v1837
    %v1847 = vmul.f32 %v1827, %v1839
    %v1848 = vadd.f32 %v1820, %v1844
    %v1849 = vadd.f32 %v1821, %v1845
    %v1850 = vadd.f32 %v1822, %v1846
    %v1851 = vadd.f32 %v1823, %v1847
    %1856 = vrot.lane.b32.xlu0 %v1848, 96
    %v1857 = vpop.permute.xlu0 %1856
    %1858 = vrot.lane.b32.xlu0 %v1849, 96
    %v1859 = vpop.permute.xlu0 %1858
    %1860 = vrot.lane.b32.xlu0 %v1850, 96
    %v1861 = vpop.permute.xlu0 %1860
    %1862 = vrot.lane.b32.xlu0 %v1851, 96
    %v1863 = vpop.permute.xlu0 %1862
    %s1868 = scalar_lea.vmem [#allocation2], 32
    %1869 = vst.msk [vmem:[%s1868] sm:$0xff] %vm125, %v1857
    %1870 = vst.msk [vmem:[%s1868 + $0x8] sm:$0xff] %vm125, %v1859
    %1871 = vst.msk [vmem:[%s1868 + $0x10] sm:$0xff] %vm125, %v1861
    %1872 = vst.msk [vmem:[%s1868 + $0x18] sm:$0xff] %vm125, %v1863
    // Predicated region
    $region46: #{tpu_custom_call.1} parent=1 // pred_check
      _
    $region47: #{tpu_custom_call.1} parent=1 // pred_check_branch
      %1874 = sbr.rel (0) target = $region49
    $region48: #{tpu_custom_call.1} parent=1 // pred_region
      %1876 = vsyncadd [#allocation3], 0
      %s1877 = sshll.u32 [#allocation2], 4
      %s1878 = int_to_ptr.vmem [resolvable:$true] %s1877
      %s1879 = sshll.u32 %s11, 4
      %s1880 = int_to_ptr.hbm [resolvable:$true] %s1879
      %1885 = dma.vmem_to_hbm [thread:$0]  %s1878, 1024, %s1880, [#allocation3], 128, 128, 8
    $region49: #{tpu_custom_call.1} parent=1 // pred_fallthru
      _
    // Predicated region
    $region50: #{tpu_custom_call.1} parent=1 // pred_check
      _
    $region51: #{tpu_custom_call.1} parent=1 // pred_check_branch
      %1887 = sbr.rel (0) target = $region53
    $region52: #{tpu_custom_call.1} parent=1 // pred_region
      %1889 = dma.done [#allocation3], 1024
    $region53: #{tpu_custom_call.1} parent=1 // pred_fallthru
      _
    %1890 = vsyncpa [#allocation3], 1

</llo_original>
